<compile_context>
chip_gen: v7x
topology: tpu7x:2x2x1
jax: 0.10.0
libtpu: 0.0.40
codegen_flags: <defaults>
</compile_context>

<pallas_src>
import functools
import math

import jax
import jax.numpy as jnp
from jax.experimental import pallas as pl
from jax.experimental.pallas import tpu as pltpu


LANE = 128  # feature dims padded (once, at init) to multiples of this


# ------------------------------- helpers ------------------------------------
def _round_up(x, m):
    return ((x + m - 1) // m) * m


def _sublane_align(dtype):
    # rows per vreg sublane group: f32 -> 8, bf16 -> 16, int8/fp8 -> 32
    return {4: 8, 2: 16, 1: 32}.get(jnp.dtype(dtype).itemsize, 8)


def _pad2d(a, rows, cols):
    r, c = a.shape
    if r == rows and c == cols:
        return a
    return jnp.pad(a, ((0, rows - r), (0, cols - c)))


@functools.lru_cache(maxsize=1)
def _vmem_capacity_bytes():
    try:
        info = pltpu.get_tpu_info()
        cap = int(getattr(info, "vmem_capacity_bytes", 0))
        if cap > 0:
            return cap
    except Exception:
        pass
    return 64 << 20  # conservative fallback: v7x per-TensorCore VMEM


def _default_tiles():
    # v5e/v6e (128 MiB VMEM): 512-wide output tiles double arithmetic intensity
    # and halve grid-step count.  v7x (64 MiB/TC): keep tiles moderate so
    # double-buffered x/w tiles + f32 accumulator comfortably fit.
    if _vmem_capacity_bytes() >= (100 << 20):
        return 512, 512, 1024
    return 256, 256, 512


def _compiler_params(dimension_semantics, vmem_bytes_needed):
    cap = int(0.75 * _vmem_capacity_bytes())  # ~96 MiB on v5e/v6e, ~48 MiB on v7x
    limit = int(min(max(int(1.5 * vmem_bytes_needed) + (8 << 20), 32 << 20), cap))
    return pltpu.CompilerParams(
        dimension_semantics=dimension_semantics,
        vmem_limit_bytes=limit,
    )


def _choose_tile(dim_pad, target, align):
    """Largest multiple of `align` <= target that divides dim_pad."""
    t = min(target, dim_pad)
    t = max(align, (t // align) * align)
    while dim_pad % t:
        t -= align
    return t


def _tol(dtype):
    return (2e-2, 2e-2) if jnp.dtype(dtype).itemsize < 4 else (1e-5, 1e-5)


# ---------------------- tiled single-layer linear kernel --------------------
def _linear_tiled_kernel(x_ref, w_ref, b_ref, o_ref, acc_ref, *, apply_relu):
    """Grid (Mt, Nt, Kt): accumulate x_tile @ w_tile into an f32 scratch; add
    bias + ReLU and store once on the last K step."""
    k = pl.program_id(2)

    @pl.when(k == 0)
    def _():
        acc_ref[...] = jnp.zeros_like(acc_ref)

    acc_ref[...] += jnp.dot(x_ref[...].astype(w_ref.dtype), w_ref[...],
                            preferred_element_type=jnp.float32)

    @pl.when(k == pl.num_programs(2) - 1)
    def _():
        y = acc_ref[...] + b_ref[...].astype(jnp.float32)
        if apply_relu:
            y = jnp.maximum(y, 0.0)
        o_ref[...] = y.astype(o_ref.dtype)


def _linear_tiled_aligned(x_p, w_p, b_p, *, apply_relu, tm, tn, tk):
    """y_p = x_p @ w_p + b_p (+ReLU) on pre-aligned operands.

    x_p:[M_pad,K_pad], w_p:[K_pad,N_pad], b_p:[1,N_pad]; M_pad%tm == N_pad%tn ==
    K_pad%tk == 0.  No padding/slicing happens here, so a chain of these keeps
    activations padded in HBM with zero wrapper-side traffic.
    """
    M_pad, K_pad = x_p.shape
    K2, N_pad = w_p.shape
    assert K_pad == K2 and b_p.shape == (1, N_pad)
    assert M_pad % tm == 0 and N_pad % tn == 0 and K_pad % tk == 0

    grid = (M_pad // tm, N_pad // tn, K_pad // tk)
    x_it = jnp.dtype(x_p.dtype).itemsize
    w_it = jnp.dtype(w_p.dtype).itemsize
    cost = pl.CostEstimate(
        flops=2 * M_pad * K_pad * N_pad,
        transcendentals=0,
        bytes_accessed=(M_pad * K_pad * x_it + K_pad * N_pad * w_it
                        + N_pad * w_it + M_pad * N_pad * w_it),
    )
    # double-buffered x/w/b and out tiles + f32 accumulator
    vmem_needed = (2 * (tm * tk * x_it + tk * tn * w_it + tn * w_it)
                   + 2 * tm * tn * w_it + tm * tn * 4)

    kernel = functools.partial(_linear_tiled_kernel, apply_relu=apply_relu)
    return pl.pallas_call(
        kernel,
        out_shape=jax.ShapeDtypeStruct((M_pad, N_pad), w_p.dtype),
        grid_spec=pltpu.PrefetchScalarGridSpec(
            num_scalar_prefetch=0,
            grid=grid,
            in_specs=[
                pl.BlockSpec((tm, tk), lambda i, j, k: (i, k)),   # x tile
                pl.BlockSpec((tk, tn), lambda i, j, k: (k, j)),   # w tile
                pl.BlockSpec((1, tn), lambda i, j, k: (0, j)),    # bias tile
            ],
            out_specs=pl.BlockSpec((tm, tn), lambda i, j, k: (i, j)),
            scratch_shapes=[pltpu.VMEM((tm, tn), jnp.float32)],
        ),
        compiler_params=_compiler_params(
            ("parallel", "parallel", "arbitrary"), vmem_needed),
        cost_estimate=cost,
    )(x_p, w_p, b_p)


# --------------------------- fused whole-MLP kernel --------------------------
def _mlp_fused_kernel(*refs, num_layers, apply_relu):
    """refs = (x_tile, w0, b0, w1, b1, ..., out_tile).  The whole layer chain
    runs on-chip: intermediate activations never round-trip through HBM."""
    o_ref = refs[-1]
    h = refs[0][...]
    for l in range(num_layers):
        w_ref = refs[1 + 2 * l]
        b_ref = refs[2 + 2 * l]
        h = jnp.dot(h.astype(w_ref.dtype), w_ref[...],
                    preferred_element_type=jnp.float32)
        h = h + b_ref[...].astype(jnp.float32)
        if apply_relu:
            h = jnp.maximum(h, 0.0)
    o_ref[...] = h.astype(o_ref.dtype)


def _resident_spec(shape, single_buffer):
    """Full-array, grid-constant block (weights/biases).  Request single
    buffering when supported: the block is never re-fetched, so the default
    double-buffer only wastes VMEM (worst on v7x's 64 MiB)."""
    idx_map = lambda i: (0, 0)
    if single_buffer and hasattr(pl, "Buffered"):
        try:
            return pl.BlockSpec(shape, idx_map, pipeline_mode=pl.Buffered(1))
        except TypeError:
            pass
    return pl.BlockSpec(shape, idx_map)


def _mlp_forward_fused(padded, x, *, act, single_buffer_weights=True):
    params = padded.params
    num_layers = len(params)
    dtype = padded.dtype
    M, K0 = x.shape
    K0_pad = int(params[0][0].shape[0])
    N_pad = int(params[-1][0].shape[1])
    assert K0 <= K0_pad

    align_m = _sublane_align(dtype)
    tm = min(_default_tiles()[0], _round_up(M, align_m))
    M_pad = _round_up(M, tm)
    # Keep >= 2 steps along the parallel axis (v7x has 2 TensorCores/chip).
    if M_pad // tm < 2 and M >= 2 * align_m:
        tm = _round_up(-(-M // 2), align_m)
        M_pad = _round_up(M, tm)

    x_p = _pad2d(x.astype(dtype), M_pad, K0_pad)   # pad input once

    inputs = [x_p]
    in_specs = [pl.BlockSpec((tm, K0_pad), lambda i: (i, 0))]
    flops = 0
    for w, b in params:
        inputs += [w, b]
        in_specs += [_resident_spec(w.shape, single_buffer_weights),
                     _resident_spec(b.shape, single_buffer_weights)]
        flops += 2 * M_pad * int(w.shape[0]) * int(w.shape[1])

    itemsize = jnp.dtype(dtype).itemsize
    cost = pl.CostEstimate(
        flops=flops,
        transcendentals=0,
        bytes_accessed=(M_pad * K0_pad * itemsize + padded.param_bytes
                        + M_pad * N_pad * itemsize),
    )
    weight_factor = 1 if single_buffer_weights else 2
    vmem_needed = (2 * tm * K0_pad * itemsize            # x tile (double-buffered)
                   + weight_factor * padded.param_bytes  # resident weights/biases
                   + 2 * tm * N_pad * itemsize           # output tile
                   + 2 * tm * padded.max_width * 4)      # f32 intermediates

    kernel = functools.partial(_mlp_fused_kernel,
                               num_layers=num_layers, apply_relu=act)
    out = pl.pallas_call(
        kernel,
        out_shape=jax.ShapeDtypeStruct((M_pad, N_pad), dtype),
        grid_spec=pltpu.PrefetchScalarGridSpec(
            num_scalar_prefetch=0,
            grid=(M_pad // tm,),
            in_specs=in_specs,
            out_specs=pl.BlockSpec((tm, N_pad), lambda i: (i, 0)),
        ),
        compiler_params=_compiler_params(("parallel",), vmem_needed),
        cost_estimate=cost,
    )(*inputs)
    return out[:M, :padded.output_dim]


# ----------------------- per-layer tiled fallback chain ----------------------
def _mlp_forward_tiled(padded, x, *, act):
    """Fallback when the whole chain does not fit in VMEM.  Activations are
    padded once and stay padded across every layer; only the final output is
    sliced back to the true shape."""
    params = padded.params
    dtype = padded.dtype
    M, _ = x.shape
    K0_pad = int(params[0][0].shape[0])

    tm_d, tn_d, tk_d = _default_tiles()
    align_m = _sublane_align(dtype)
    tm = min(tm_d, _round_up(M, align_m))
    M_pad = _round_up(M, tm)
    if M_pad // tm < 2 and M >= 2 * align_m:       # use both v7x TensorCores
        tm = _round_up(-(-M // 2), align_m)
        M_pad = _round_up(M, tm)

    h = _pad2d(x.astype(dtype), M_pad, K0_pad)     # pad input once
    for w, b in params:
        K_pad, N_pad = int(w.shape[0]), int(w.shape[1])
        tk = _choose_tile(K_pad, tk_d, LANE)
        tn = _choose_tile(N_pad, tn_d, LANE)
        h = _linear_tiled_aligned(h, w, b, apply_relu=act, tm=tm, tn=tn, tk=tk)
    return h[:M, :padded.output_dim]


# ------------------------------- MLP module ----------------------------------
class PaddedMLP:
    """Weights/biases pre-padded once to lane-dense (multiple-of-128) dims."""

    def __init__(self, params, input_dim, output_dim):
        self.params = params
        self.input_dim = input_dim
        self.output_dim = output_dim
        self.dtype = params[0][0].dtype
        self.param_bytes = sum(int((w.size + b.size) * w.dtype.itemsize)
                               for w, b in params)
        self.max_width = max([int(params[0][0].shape[0])]
                             + [int(w.shape[1]) for w, _ in params])


def pad_mlp_params(params):
    """One-time padding of [in,out] weights and [1,out] biases to multiples of
    128 (zero padding is inert through matmul + bias + ReLU)."""
    input_dim = int(params[0][0].shape[0])
    output_dim = int(params[-1][0].shape[1])
    padded = []
    for w, b in params:
        k_pad = _round_up(int(w.shape[0]), LANE)
        n_pad = _round_up(int(w.shape[1]), LANE)
        padded.append((_pad2d(w, k_pad, n_pad), _pad2d(b, 1, n_pad)))
    return PaddedMLP(padded, input_dim, output_dim)


def init_mlp_params(key, input_dim, hidden_dim, output_dim, dtype=jnp.float32):
    """nn.Linear-style init: U(-1/sqrt(fan_in), 1/sqrt(fan_in)); weights stored
    as [in, out].  Pass dtype=jnp.bfloat16 for MXU-native bf16 weights (kernels
    still accumulate in f32)."""
    concat_dim = [input_dim] + list(hidden_dim) + [output_dim]
    params = []
    for i in range(len(concat_dim) - 1):
        fan_in, fan_out = concat_dim[i], concat_dim[i + 1]
        key, kw, kb = jax.random.split(key, 3)
        bound = 1.0 / math.sqrt(fan_in)
        w = jax.random.uniform(kw, (fan_in, fan_out), dtype, -bound, bound)
        b = jax.random.uniform(kb, (1, fan_out), dtype, -bound, bound)
        params.append((w, b))
    return params


def mlp_forward(padded, x, *, act=False, dropout=False, p=0.1):
    """Forward pass matching MLP.forward (eval mode / dropout=False default)."""
    # TODO(synk): training-mode F.dropout is not lowered here (module default is
    # dropout=False); an in-kernel inverted-dropout mask would use
    # pltpu.prng_seed + pltpu.prng_random_bits.
    del dropout, p
    if isinstance(padded, (list, tuple)):
        padded = pad_mlp_params(padded)   # prefer passing pad_mlp_params() output
    fused_limit = _vmem_capacity_bytes() // 4   # ~32 MiB v5e/v6e, ~16 MiB v7x
    if padded.param_bytes <= fused_limit:
        for single_buf in (True, False):
            try:
                return _mlp_forward_fused(padded, x, act=act,
                                          single_buffer_weights=single_buf)
            except Exception:
                continue
    return _mlp_forward_tiled(padded, x, act=act)


def mlp_reference(params, x, *, act=False):
    for w, b in params:
        x = x @ w + b
        if act:
            x = jax.nn.relu(x)
    return x


# ---------------------------------- demo -------------------------------------
if __name__ == "__main__":
    key = jax.random.PRNGKey(0)
    batch = 16
    input_dim, hidden_dim, output_dim = 32, (64, 48), 16

    kx, kp, kc = jax.random.split(key, 3)
    x = jax.random.normal(kx, (batch, input_dim), jnp.float32)
    params = init_mlp_params(kp, input_dim, hidden_dim, output_dim)
    padded = pad_mlp_params(params)            # one-time, cached weight padding

    ref = mlp_reference(params, x, act=True)
    atol, rtol = _tol(padded.dtype)

    # 1) Fused whole-chain kernel: weights VMEM-resident (single-buffered),
    #    intermediate activations never touch HBM.
    out = jax.block_until_ready(mlp_forward(padded, x, act=True))
    assert out.shape == (batch, output_dim)
    assert jnp.allclose(out, ref, atol=atol, rtol=rtol), "fused mismatch vs reference"

    # 2) Per-layer tiled fallback: activations stay padded across the chain.
    out2 = jax.block_until_ready(_mlp_forward_tiled(padded, x, act=True))
    assert out2.shape == (batch, output_dim)
    assert jnp.allclose(out2, ref, atol=atol, rtol=rtol), "tiled mismatch vs reference"

    # 3) Multi-step M/N/K accumulation check on pre-aligned operands.
    k1, k2, k3 = jax.random.split(kc, 3)
    xk = jax.random.normal(k1, (16, 256), jnp.float32)
    wk = jax.random.normal(k2, (256, 256), jnp.float32) * 0.05
    bk = jax.random.normal(k3, (1, 256), jnp.float32)
    yk = _linear_tiled_aligned(xk, wk, bk, apply_relu=True, tm=8, tn=128, tk=128)
    yk = jax.block_until_ready(yk)
    refk = jax.nn.relu(xk @ wk + bk)
    assert jnp.allclose(yk, refk, atol=1e-2, rtol=1e-2), "K-accumulation mismatch"

    print("KERNEL_OK")
</pallas_src>

<mosaic_0001>
module attributes {stable_mosaic.version = 11 : i64} {
  func.func @_mlp_fused_kernel(%arg0: i32, %arg1: memref<8x128xf32, #tpu.memory_space<vmem>>, %arg2: memref<128x128xf32, #tpu.memory_space<vmem>>, %arg3: memref<1x128xf32, #tpu.memory_space<vmem>>, %arg4: memref<128x128xf32, #tpu.memory_space<vmem>>, %arg5: memref<1x128xf32, #tpu.memory_space<vmem>>, %arg6: memref<128x128xf32, #tpu.memory_space<vmem>>, %arg7: memref<1x128xf32, #tpu.memory_space<vmem>>, %arg8: memref<8x128xf32, #tpu.memory_space<vmem>>) attributes {dimension_semantics = [#tpu.dimension_semantics<parallel>], iteration_bounds = array<i64: 2>, scalar_prefetch = 0 : i64, scratch_operands = 0 : i64, tpu.core_type = #tpu.core_type<tc>, window_params = [{transform_indices = @transform_0, window_bounds = array<i64: 8, 128>}, {pipeline_mode = #tpu.pipeline_mode<synchronous>, transform_indices = @transform_1, window_bounds = array<i64: 128, 128>}, {pipeline_mode = #tpu.pipeline_mode<synchronous>, transform_indices = @transform_2, window_bounds = array<i64: 1, 128>}, {pipeline_mode = #tpu.pipeline_mode<synchronous>, transform_indices = @transform_3, window_bounds = array<i64: 128, 128>}, {pipeline_mode = #tpu.pipeline_mode<synchronous>, transform_indices = @transform_4, window_bounds = array<i64: 1, 128>}, {pipeline_mode = #tpu.pipeline_mode<synchronous>, transform_indices = @transform_5, window_bounds = array<i64: 128, 128>}, {pipeline_mode = #tpu.pipeline_mode<synchronous>, transform_indices = @transform_6, window_bounds = array<i64: 1, 128>}, {transform_indices = @transform_7, window_bounds = array<i64: 8, 128>}]} {
    %c0 = arith.constant 0 : index
    %c0_0 = arith.constant 0 : index
    %0 = vector.load %arg1[%c0, %c0_0] : memref<8x128xf32, #tpu.memory_space<vmem>>, vector<8x128xf32>
    %c0_1 = arith.constant 0 : index
    %c0_2 = arith.constant 0 : index
    %1 = vector.load %arg2[%c0_1, %c0_2] : memref<128x128xf32, #tpu.memory_space<vmem>>, vector<128x128xf32>
    %cst = arith.constant dense<0.000000e+00> : vector<8x128xf32>
    %2 = tpu.matmul %0, %1, %cst {dimension_numbers = #tpu.dot_dimension_numbers<[1], [0], [0], [1], [0, 0, 1, 1], [], []>} : vector<8x128xf32>, vector<128x128xf32>, vector<8x128xf32> -> vector<8x128xf32>
    %c0_3 = arith.constant 0 : index
    %c0_4 = arith.constant 0 : index
    %3 = vector.load %arg3[%c0_3, %c0_4] : memref<1x128xf32, #tpu.memory_space<vmem>>, vector<1x128xf32>
    %4 = vector.broadcast %3 : vector<1x128xf32> to vector<8x128xf32>
    %5 = arith.addf %2, %4 : vector<8x128xf32>
    %cst_5 = arith.constant 0.000000e+00 : f32
    %6 = vector.broadcast %cst_5 : f32 to vector<8x128xf32>
    %7 = arith.maximumf %5, %6 : vector<8x128xf32>
    %c0_6 = arith.constant 0 : index
    %c0_7 = arith.constant 0 : index
    %8 = vector.load %arg4[%c0_6, %c0_7] : memref<128x128xf32, #tpu.memory_space<vmem>>, vector<128x128xf32>
    %cst_8 = arith.constant dense<0.000000e+00> : vector<8x128xf32>
    %9 = tpu.matmul %7, %8, %cst_8 {dimension_numbers = #tpu.dot_dimension_numbers<[1], [0], [0], [1], [0, 0, 1, 1], [], []>} : vector<8x128xf32>, vector<128x128xf32>, vector<8x128xf32> -> vector<8x128xf32>
    %c0_9 = arith.constant 0 : index
    %c0_10 = arith.constant 0 : index
    %10 = vector.load %arg5[%c0_9, %c0_10] : memref<1x128xf32, #tpu.memory_space<vmem>>, vector<1x128xf32>
    %11 = vector.broadcast %10 : vector<1x128xf32> to vector<8x128xf32>
    %12 = arith.addf %9, %11 : vector<8x128xf32>
    %cst_11 = arith.constant 0.000000e+00 : f32
    %13 = vector.broadcast %cst_11 : f32 to vector<8x128xf32>
    %14 = arith.maximumf %12, %13 : vector<8x128xf32>
    %c0_12 = arith.constant 0 : index
    %c0_13 = arith.constant 0 : index
    %15 = vector.load %arg6[%c0_12, %c0_13] : memref<128x128xf32, #tpu.memory_space<vmem>>, vector<128x128xf32>
    %cst_14 = arith.constant dense<0.000000e+00> : vector<8x128xf32>
    %16 = tpu.matmul %14, %15, %cst_14 {dimension_numbers = #tpu.dot_dimension_numbers<[1], [0], [0], [1], [0, 0, 1, 1], [], []>} : vector<8x128xf32>, vector<128x128xf32>, vector<8x128xf32> -> vector<8x128xf32>
    %c0_15 = arith.constant 0 : index
    %c0_16 = arith.constant 0 : index
    %17 = vector.load %arg7[%c0_15, %c0_16] : memref<1x128xf32, #tpu.memory_space<vmem>>, vector<1x128xf32>
    %18 = vector.broadcast %17 : vector<1x128xf32> to vector<8x128xf32>
    %19 = arith.addf %16, %18 : vector<8x128xf32>
    %cst_17 = arith.constant 0.000000e+00 : f32
    %20 = vector.broadcast %cst_17 : f32 to vector<8x128xf32>
    %21 = arith.maximumf %19, %20 : vector<8x128xf32>
    %c0_18 = arith.constant 0 : index
    %c0_19 = arith.constant 0 : index
    %22 = vector.load %arg8[%c0_18, %c0_19] : memref<8x128xf32, #tpu.memory_space<vmem>>, vector<8x128xf32>
    tpu.vector_store %arg8[%c0_18, %c0_19], %21 {strides = array<i32>} : memref<8x128xf32, #tpu.memory_space<vmem>>, vector<8x128xf32>,
    return
  }
  func.func @transform_0(%arg0: i32) -> (i32, i32) {
    %c0_i32 = arith.constant 0 : i32
    %c0_i32_0 = arith.constant 0 : i32
    return %arg0, %c0_i32 : i32, i32
  }
  func.func @transform_1(%arg0: i32) -> (i32, i32) {
    %c0_i32 = arith.constant 0 : i32
    %c0_i32_0 = arith.constant 0 : i32
    %c0_i32_1 = arith.constant 0 : i32
    return %c0_i32, %c0_i32_0 : i32, i32
  }
  func.func @transform_2(%arg0: i32) -> (i32, i32) {
    %c0_i32 = arith.constant 0 : i32
    %c0_i32_0 = arith.constant 0 : i32
    %c0_i32_1 = arith.constant 0 : i32
    return %c0_i32, %c0_i32_0 : i32, i32
  }
  func.func @transform_3(%arg0: i32) -> (i32, i32) {
    %c0_i32 = arith.constant 0 : i32
    %c0_i32_0 = arith.constant 0 : i32
    %c0_i32_1 = arith.constant 0 : i32
    return %c0_i32, %c0_i32_0 : i32, i32
  }
  func.func @transform_4(%arg0: i32) -> (i32, i32) {
    %c0_i32 = arith.constant 0 : i32
    %c0_i32_0 = arith.constant 0 : i32
    %c0_i32_1 = arith.constant 0 : i32
    return %c0_i32, %c0_i32_0 : i32, i32
  }
  func.func @transform_5(%arg0: i32) -> (i32, i32) {
    %c0_i32 = arith.constant 0 : i32
    %c0_i32_0 = arith.constant 0 : i32
    %c0_i32_1 = arith.constant 0 : i32
    return %c0_i32, %c0_i32_0 : i32, i32
  }
  func.func @transform_6(%arg0: i32) -> (i32, i32) {
    %c0_i32 = arith.constant 0 : i32
    %c0_i32_0 = arith.constant 0 : i32
    %c0_i32_1 = arith.constant 0 : i32
    return %c0_i32, %c0_i32_0 : i32, i32
  }
  func.func @transform_7(%arg0: i32) -> (i32, i32) {
    %c0_i32 = arith.constant 0 : i32
    %c0_i32_0 = arith.constant 0 : i32
    return %arg0, %c0_i32 : i32, i32
  }
}

module attributes {stable_mosaic.version = 11 : i64} {
  func.func @_mlp_fused_kernel(%arg0: i32, %arg1: memref<8x128xf32, #tpu.memory_space<vmem>>, %arg2: memref<128x128xf32, #tpu.memory_space<vmem>>, %arg3: memref<1x128xf32, #tpu.memory_space<vmem>>, %arg4: memref<128x128xf32, #tpu.memory_space<vmem>>, %arg5: memref<1x128xf32, #tpu.memory_space<vmem>>, %arg6: memref<128x128xf32, #tpu.memory_space<vmem>>, %arg7: memref<1x128xf32, #tpu.memory_space<vmem>>, %arg8: memref<8x128xf32, #tpu.memory_space<vmem>>) attributes {dimension_semantics = [#tpu.dimension_semantics<parallel>], iteration_bounds = array<i64: 2>, scalar_prefetch = 0 : i64, scratch_operands = 0 : i64, tpu.core_type = #tpu.core_type<tc>, window_params = [{transform_indices = @transform_0, window_bounds = array<i64: 8, 128>}, {pipeline_mode = #tpu.pipeline_mode<synchronous>, transform_indices = @transform_1, window_bounds = array<i64: 128, 128>}, {pipeline_mode = #tpu.pipeline_mode<synchronous>, transform_indices = @transform_2, window_bounds = array<i64: 1, 128>}, {pipeline_mode = #tpu.pipeline_mode<synchronous>, transform_indices = @transform_3, window_bounds = array<i64: 128, 128>}, {pipeline_mode = #tpu.pipeline_mode<synchronous>, transform_indices = @transform_4, window_bounds = array<i64: 1, 128>}, {pipeline_mode = #tpu.pipeline_mode<synchronous>, transform_indices = @transform_5, window_bounds = array<i64: 128, 128>}, {pipeline_mode = #tpu.pipeline_mode<synchronous>, transform_indices = @transform_6, window_bounds = array<i64: 1, 128>}, {transform_indices = @transform_7, window_bounds = array<i64: 8, 128>}]} {
    %c0 = arith.constant 0 : index
    %c0_0 = arith.constant 0 : index
    %0 = vector.load %arg1[%c0, %c0_0] : memref<8x128xf32, #tpu.memory_space<vmem>>, vector<8x128xf32>
    %c0_1 = arith.constant 0 : index
    %c0_2 = arith.constant 0 : index
    %1 = vector.load %arg2[%c0_1, %c0_2] : memref<128x128xf32, #tpu.memory_space<vmem>>, vector<128x128xf32>
    %cst = arith.constant dense<0.000000e+00> : vector<8x128xf32>
    %2 = tpu.matmul %0, %1, %cst {dimension_numbers = #tpu.dot_dimension_numbers<[1], [0], [0], [1], [0, 0, 1, 1], [], []>} : vector<8x128xf32>, vector<128x128xf32>, vector<8x128xf32> -> vector<8x128xf32>
    %c0_3 = arith.constant 0 : index
    %c0_4 = arith.constant 0 : index
    %3 = vector.load %arg3[%c0_3, %c0_4] : memref<1x128xf32, #tpu.memory_space<vmem>>, vector<1x128xf32>
    %4 = vector.broadcast %3 : vector<1x128xf32> to vector<8x128xf32>
    %5 = arith.addf %2, %4 : vector<8x128xf32>
    %cst_5 = arith.constant 0.000000e+00 : f32
    %6 = vector.broadcast %cst_5 : f32 to vector<8x128xf32>
    %7 = arith.maximumf %5, %6 : vector<8x128xf32>
    %c0_6 = arith.constant 0 : index
    %c0_7 = arith.constant 0 : index
    %8 = vector.load %arg4[%c0_6, %c0_7] : memref<128x128xf32, #tpu.memory_space<vmem>>, vector<128x128xf32>
    %cst_8 = arith.constant dense<0.000000e+00> : vector<8x128xf32>
    %9 = tpu.matmul %7, %8, %cst_8 {dimension_numbers = #tpu.dot_dimension_numbers<[1], [0], [0], [1], [0, 0, 1, 1], [], []>} : vector<8x128xf32>, vector<128x128xf32>, vector<8x128xf32> -> vector<8x128xf32>
    %c0_9 = arith.constant 0 : index
    %c0_10 = arith.constant 0 : index
    %10 = vector.load %arg5[%c0_9, %c0_10] : memref<1x128xf32, #tpu.memory_space<vmem>>, vector<1x128xf32>
    %11 = vector.broadcast %10 : vector<1x128xf32> to vector<8x128xf32>
    %12 = arith.addf %9, %11 : vector<8x128xf32>
    %cst_11 = arith.constant 0.000000e+00 : f32
    %13 = vector.broadcast %cst_11 : f32 to vector<8x128xf32>
    %14 = arith.maximumf %12, %13 : vector<8x128xf32>
    %c0_12 = arith.constant 0 : index
    %c0_13 = arith.constant 0 : index
    %15 = vector.load %arg6[%c0_12, %c0_13] : memref<128x128xf32, #tpu.memory_space<vmem>>, vector<128x128xf32>
    %cst_14 = arith.constant dense<0.000000e+00> : vector<8x128xf32>
    %16 = tpu.matmul %14, %15, %cst_14 {dimension_numbers = #tpu.dot_dimension_numbers<[1], [0], [0], [1], [0, 0, 1, 1], [], []>} : vector<8x128xf32>, vector<128x128xf32>, vector<8x128xf32> -> vector<8x128xf32>
    %c0_15 = arith.constant 0 : index
    %c0_16 = arith.constant 0 : index
    %17 = vector.load %arg7[%c0_15, %c0_16] : memref<1x128xf32, #tpu.memory_space<vmem>>, vector<1x128xf32>
    %18 = vector.broadcast %17 : vector<1x128xf32> to vector<8x128xf32>
    %19 = arith.addf %16, %18 : vector<8x128xf32>
    %cst_17 = arith.constant 0.000000e+00 : f32
    %20 = vector.broadcast %cst_17 : f32 to vector<8x128xf32>
    %21 = arith.maximumf %19, %20 : vector<8x128xf32>
    %c0_18 = arith.constant 0 : index
    %c0_19 = arith.constant 0 : index
    %22 = vector.load %arg8[%c0_18, %c0_19] : memref<8x128xf32, #tpu.memory_space<vmem>>, vector<8x128xf32>
    tpu.vector_store %arg8[%c0_18, %c0_19], %21 {strides = array<i32>} : memref<8x128xf32, #tpu.memory_space<vmem>>, vector<8x128xf32>,
    return
  }
  func.func @transform_0(%arg0: i32) -> (i32, i32) {
    %c0_i32 = arith.constant 0 : i32
    %c0_i32_0 = arith.constant 0 : i32
    return %arg0, %c0_i32 : i32, i32
  }
  func.func @transform_1(%arg0: i32) -> (i32, i32) {
    %c0_i32 = arith.constant 0 : i32
    %c0_i32_0 = arith.constant 0 : i32
    %c0_i32_1 = arith.constant 0 : i32
    return %c0_i32, %c0_i32_0 : i32, i32
  }
  func.func @transform_2(%arg0: i32) -> (i32, i32) {
    %c0_i32 = arith.constant 0 : i32
    %c0_i32_0 = arith.constant 0 : i32
    %c0_i32_1 = arith.constant 0 : i32
    return %c0_i32, %c0_i32_0 : i32, i32
  }
  func.func @transform_3(%arg0: i32) -> (i32, i32) {
    %c0_i32 = arith.constant 0 : i32
    %c0_i32_0 = arith.constant 0 : i32
    %c0_i32_1 = arith.constant 0 : i32
    return %c0_i32, %c0_i32_0 : i32, i32
  }
  func.func @transform_4(%arg0: i32) -> (i32, i32) {
    %c0_i32 = arith.constant 0 : i32
    %c0_i32_0 = arith.constant 0 : i32
    %c0_i32_1 = arith.constant 0 : i32
    return %c0_i32, %c0_i32_0 : i32, i32
  }
  func.func @transform_5(%arg0: i32) -> (i32, i32) {
    %c0_i32 = arith.constant 0 : i32
    %c0_i32_0 = arith.constant 0 : i32
    %c0_i32_1 = arith.constant 0 : i32
    return %c0_i32, %c0_i32_0 : i32, i32
  }
  func.func @transform_6(%arg0: i32) -> (i32, i32) {
    %c0_i32 = arith.constant 0 : i32
    %c0_i32_0 = arith.constant 0 : i32
    %c0_i32_1 = arith.constant 0 : i32
    return %c0_i32, %c0_i32_0 : i32, i32
  }
  func.func @transform_7(%arg0: i32) -> (i32, i32) {
    %c0_i32 = arith.constant 0 : i32
    %c0_i32_0 = arith.constant 0 : i32
    return %arg0, %c0_i32 : i32, i32
  }
}

module attributes {stable_mosaic.version = 11 : i64} {
  func.func @_linear_tiled_kernel(%arg0: i32, %arg1: i32, %arg2: i32, %arg3: memref<8x128xf32, #tpu.memory_space<vmem>>, %arg4: memref<128x128xf32, #tpu.memory_space<vmem>>, %arg5: memref<1x128xf32, #tpu.memory_space<vmem>>, %arg6: memref<8x128xf32, #tpu.memory_space<vmem>>, %arg7: memref<8x128xf32, #tpu.memory_space<vmem>>) attributes {dimension_semantics = [#tpu.dimension_semantics<parallel>, #tpu.dimension_semantics<parallel>, #tpu.dimension_semantics<arbitrary>], iteration_bounds = array<i64: 2, 1, 1>, scalar_prefetch = 0 : i64, scratch_operands = 1 : i64, tpu.core_type = #tpu.core_type<tc>, window_params = [{transform_indices = @transform_0, window_bounds = array<i64: 8, 128>}, {transform_indices = @transform_1, window_bounds = array<i64: 128, 128>}, {transform_indices = @transform_2, window_bounds = array<i64: 1, 128>}, {transform_indices = @transform_3, window_bounds = array<i64: 8, 128>}]} {
    %c0_i32 = arith.constant 0 : i32
    %0 = arith.cmpi eq, %arg2, %c0_i32 : i32
    %1 = arith.extui %0 : i1 to i32
    %c0_i32_0 = arith.constant 0 : i32
    %2 = arith.cmpi ne, %1, %c0_i32_0 : i32
    scf.if %2 {
      %cst_10 = arith.constant 0.000000e+00 : f32
      %12 = vector.broadcast %cst_10 : f32 to vector<8x128xf32>
      %c0_11 = arith.constant 0 : index
      %c0_12 = arith.constant 0 : index
      %13 = vector.load %arg7[%c0_11, %c0_12] : memref<8x128xf32, #tpu.memory_space<vmem>>, vector<8x128xf32>
      tpu.vector_store %arg7[%c0_11, %c0_12], %12 {strides = array<i32>} : memref<8x128xf32, #tpu.memory_space<vmem>>, vector<8x128xf32>,
    } else {
    }
    %c0 = arith.constant 0 : index
    %c0_1 = arith.constant 0 : index
    %3 = vector.load %arg7[%c0, %c0_1] : memref<8x128xf32, #tpu.memory_space<vmem>>, vector<8x128xf32>
    %c0_2 = arith.constant 0 : index
    %c0_3 = arith.constant 0 : index
    %4 = vector.load %arg3[%c0_2, %c0_3] : memref<8x128xf32, #tpu.memory_space<vmem>>, vector<8x128xf32>
    %c0_4 = arith.constant 0 : index
    %c0_5 = arith.constant 0 : index
    %5 = vector.load %arg4[%c0_4, %c0_5] : memref<128x128xf32, #tpu.memory_space<vmem>>, vector<128x128xf32>
    %cst = arith.constant dense<0.000000e+00> : vector<8x128xf32>
    %6 = tpu.matmul %4, %5, %cst {dimension_numbers = #tpu.dot_dimension_numbers<[1], [0], [0], [1], [0, 0, 1, 1], [], []>} : vector<8x128xf32>, vector<128x128xf32>, vector<8x128xf32> -> vector<8x128xf32>
    %7 = arith.addf %3, %6 : vector<8x128xf32>
    %c0_6 = arith.constant 0 : index
    %c0_7 = arith.constant 0 : index
    %8 = vector.load %arg7[%c0_6, %c0_7] : memref<8x128xf32, #tpu.memory_space<vmem>>, vector<8x128xf32>
    tpu.vector_store %arg7[%c0_6, %c0_7], %7 {strides = array<i32>} : memref<8x128xf32, #tpu.memory_space<vmem>>, vector<8x128xf32>,
    %c0_i32_8 = arith.constant 0 : i32
    %9 = arith.cmpi eq, %arg2, %c0_i32_8 : i32
    %10 = arith.extui %9 : i1 to i32
    %c0_i32_9 = arith.constant 0 : i32
    %11 = arith.cmpi ne, %10, %c0_i32_9 : i32
    scf.if %11 {
      %c0_10 = arith.constant 0 : index
      %c0_11 = arith.constant 0 : index
      %12 = vector.load %arg7[%c0_10, %c0_11] : memref<8x128xf32, #tpu.memory_space<vmem>>, vector<8x128xf32>
      %c0_12 = arith.constant 0 : index
      %c0_13 = arith.constant 0 : index
      %13 = vector.load %arg5[%c0_12, %c0_13] : memref<1x128xf32, #tpu.memory_space<vmem>>, vector<1x128xf32>
      %14 = vector.broadcast %13 : vector<1x128xf32> to vector<8x128xf32>
      %15 = arith.addf %12, %14 : vector<8x128xf32>
      %cst_14 = arith.constant 0.000000e+00 : f32
      %16 = vector.broadcast %cst_14 : f32 to vector<8x128xf32>
      %17 = arith.maximumf %15, %16 : vector<8x128xf32>
      %c0_15 = arith.constant 0 : index
      %c0_16 = arith.constant 0 : index
      %18 = vector.load %arg6[%c0_15, %c0_16] : memref<8x128xf32, #tpu.memory_space<vmem>>, vector<8x128xf32>
      tpu.vector_store %arg6[%c0_15, %c0_16], %17 {strides = array<i32>} : memref<8x128xf32, #tpu.memory_space<vmem>>, vector<8x128xf32>,
    } else {
    }
    return
  }
  func.func @transform_0(%arg0: i32, %arg1: i32, %arg2: i32) -> (i32, i32) {
    %c0_i32 = arith.constant 0 : i32
    return %arg0, %arg2 : i32, i32
  }
  func.func @transform_1(%arg0: i32, %arg1: i32, %arg2: i32) -> (i32, i32) {
    %c0_i32 = arith.constant 0 : i32
    return %arg2, %arg1 : i32, i32
  }
  func.func @transform_2(%arg0: i32, %arg1: i32, %arg2: i32) -> (i32, i32) {
    %c0_i32 = arith.constant 0 : i32
    %c0_i32_0 = arith.constant 0 : i32
    return %c0_i32, %arg1 : i32, i32
  }
  func.func @transform_3(%arg0: i32, %arg1: i32, %arg2: i32) -> (i32, i32) {
    %c0_i32 = arith.constant 0 : i32
    return %arg0, %arg1 : i32, i32
  }
}

</mosaic_0001>

<llo_original>
// kernel: tpu_custom_call.1
$region0: #{tpu_custom_call.1}
  #allocation0 [shape = 'u32[]', space=smem, size = 0x4, offset = 0x4, fixed_abs, tag = 'smem constant byte address 0x4 - core index']
  #allocation1 [shape = 'u32[144,128]{1,0:T(1,128)}', space=vmem, size = 0x12000, scoped, tag = 'internal scratch']
  %s0 = inlined_call_operand.hbm [shape: f32[16,128], index: 0, kind: input, shape index: {}]
  %s1 = inlined_call_operand.hbm [shape: f32[128,128], index: 1, kind: input, shape index: {}]
  %s2 = inlined_call_operand.vmem [shape: f32[1,128], index: 2, kind: input, shape index: {}]
  %s3 = inlined_call_operand.hbm [shape: f32[128,128], index: 3, kind: input, shape index: {}]
  %s4 = inlined_call_operand.vmem [shape: f32[1,128], index: 4, kind: input, shape index: {}]
  %s5 = inlined_call_operand.hbm [shape: f32[128,128], index: 5, kind: input, shape index: {}]
  %s6 = inlined_call_operand.vmem [shape: f32[1,128], index: 6, kind: input, shape index: {}]
  %s7 = inlined_call_operand.hbm [shape: f32[16,128], index: 7, kind: output, shape index: {}]
  %s8 = sld [smem:[#allocation0]]
  $region77: #{tpu_custom_call.1} parent=0
    _
  %s10 = ssub.s32 1, %s8
  %s11 = scalar_select 0, %s10, %s8
  $region1: #{tpu_custom_call.1} parent=0
    #allocation2 [shape = 'u8[8192]{0}', space=vmem, size = 0x2000, scoped, tag = 'input window, operand 0']
    #allocation3 [shape = 's32[2]{0}', space=sflag, size = 0x8, scoped, tag = 'scoped memory for tpu_custom_call.1']
    #allocation4 [shape = 's32[2]{0}', space=sflag, size = 0x8, scoped, tag = 'scoped memory for tpu_custom_call.1']
    #allocation5 [shape = 'u8[65536]{0}', space=vmem, size = 0x10000, scoped, tag = 'input window, operand 1, single buffered']
    #allocation6 [shape = 's32[1]{0}', space=sflag, size = 0x4, scoped, tag = 'scoped memory for tpu_custom_call.1']
    #allocation7 [shape = 'u8[65536]{0}', space=vmem, size = 0x10000, scoped, tag = 'input window, operand 3, single buffered']
    #allocation8 [shape = 'u8[65536]{0}', space=vmem, size = 0x10000, scoped, tag = 'input window, operand 5, single buffered']
    #allocation9 [shape = 's32[1]{0}', space=sflag, size = 0x4, scoped, tag = 'scoped memory for tpu_custom_call.1']
    #allocation10 [shape = 'u8[8192]{0}', space=vmem, size = 0x2000, scoped, tag = 'output window, operand 0']
    %12 = vsyncpa [#allocation3], 0
    %s13 = scalar_lea.sflag [#allocation3], 1
    %14 = vsyncpa %s13, 0
    %15 = vsyncpa [#allocation6], 0
    %16 = vsyncpa [#allocation9], 0
    %17 = vsyncpa [#allocation4], 0
    %s18 = scalar_lea.sflag [#allocation4], 1
    %19 = vsyncpa %s18, 0
    loop: start=0, step=1, limit=4
    $region2: #{tpu_custom_call.1} parent=1 // loop_pre_header
      _
    $region3: #{tpu_custom_call.1} parent=1 // loop_header
      %s21 = sphi 0, %s25
      %p22 = scmp.ge.s32.totalorder %s21, 4
      %s31 = sphi 0, %s33
      %s34 = sphi 0, %s31
      %s35 = sphi 0, %s34
      %s51 = sphi 0, %s35
      %s55 = sphi 0, %s55
      %s57 = sphi 0, %s55
      %s58 = sphi 0, %s57
      %s72 = sphi 0, %s58
      %s76 = sphi 0, %s76
      %s78 = sphi 0, %s76
      %s79 = sphi 0, %s78
      %s93 = sphi 0, %s79
      %s97 = sphi 0, %s97
      %s99 = sphi 0, %s97
      %s100 = sphi 0, %s99
      %s114 = sphi 0, %s100
      %s118 = sphi 0, %s118
      %s120 = sphi 0, %s118
      %s121 = sphi 0, %s120
      %s135 = sphi 0, %s121
      %s139 = sphi 0, %s139
      %s141 = sphi 0, %s139
      %s142 = sphi 0, %s141
      %s156 = sphi 0, %s142
      %s160 = sphi 0, %s160
      %s162 = sphi 0, %s160
      %s163 = sphi 0, %s162
      %s177 = sphi 0, %s163
      %s183 = sphi 0, %s185
      %s186 = sphi 0, %s183
      %s187 = sphi 0, %s186
      %s203 = sphi 0, %s187
    $region4: #{tpu_custom_call.1} parent=1 // loop_header_branch
      %24 = sbr.rel (%p22) target = $region8
    $region5: #{tpu_custom_call.1} parent=1 // loop_body
      %s26 = ssub.s32 %s21, 1
      %s27 = ssub.s32 %s21, 2
      %s28 = sadd.s32 %s21, 1
      %s29 = ssub.s32 %s21, %s28
      %p30 = scmp.eq.s32.totalorder %s29, 0
      %s32 = sadd.s32 %s31, 1
      %s33 = scalar_select %p30, %s31, %s32
      %p36 = pneg %p30
      %p37 = scmp.eq.s32.totalorder %s21, 1
      %p38 = por %p36, %p37
      %p39 = scmp.ne.s32.totalorder %s31, %s34
      %p40 = scmp.eq.s32.totalorder %s21, 0
      %p41 = por %p39, %p40
      %p42 = scmp.ne.s32.totalorder %s31, %s34
      %p43 = scmp.eq.s32.totalorder %s26, 1
      %p44 = por %p42, %p43
      %p45 = scmp.ne.s32.totalorder %s34, %s35
      %p46 = scmp.eq.s32.totalorder %s26, 0
      %p47 = por %p45, %p46
      %p48 = scmp.ne.s32.totalorder %s34, %s35
      %p49 = scmp.eq.s32.totalorder %s27, 1
      %p50 = por %p48, %p49
      %p52 = scmp.ne.s32.totalorder %s35, %s51
      %p53 = scmp.eq.s32.totalorder %s27, 0
      %p54 = por %p52, %p53
      %s56 = sadd.s32 %s55, 1
      %p59 = scmp.eq.s32.totalorder %s21, 1
      %p60 = scmp.ne.s32.totalorder %s55, %s57
      %p61 = scmp.eq.s32.totalorder %s21, 0
      %p62 = por %p60, %p61
      %p63 = scmp.ne.s32.totalorder %s55, %s57
      %p64 = scmp.eq.s32.totalorder %s26, 1
      %p65 = por %p63, %p64
      %p66 = scmp.ne.s32.totalorder %s57, %s58
      %p67 = scmp.eq.s32.totalorder %s26, 0
      %p68 = por %p66, %p67
      %p69 = scmp.ne.s32.totalorder %s57, %s58
      %p70 = scmp.eq.s32.totalorder %s27, 1
      %p71 = por %p69, %p70
      %p73 = scmp.ne.s32.totalorder %s58, %s72
      %p74 = scmp.eq.s32.totalorder %s27, 0
      %p75 = por %p73, %p74
      %s77 = sadd.s32 %s76, 1
      %p80 = scmp.eq.s32.totalorder %s21, 1
      %p81 = scmp.ne.s32.totalorder %s76, %s78
      %p82 = scmp.eq.s32.totalorder %s21, 0
      %p83 = por %p81, %p82
      %p84 = scmp.ne.s32.totalorder %s76, %s78
      %p85 = scmp.eq.s32.totalorder %s26, 1
      %p86 = por %p84, %p85
      %p87 = scmp.ne.s32.totalorder %s78, %s79
      %p88 = scmp.eq.s32.totalorder %s26, 0
      %p89 = por %p87, %p88
      %p90 = scmp.ne.s32.totalorder %s78, %s79
      %p91 = scmp.eq.s32.totalorder %s27, 1
      %p92 = por %p90, %p91
      %p94 = scmp.ne.s32.totalorder %s79, %s93
      %p95 = scmp.eq.s32.totalorder %s27, 0
      %p96 = por %p94, %p95
      %s98 = sadd.s32 %s97, 1
      %p101 = scmp.eq.s32.totalorder %s21, 1
      %p102 = scmp.ne.s32.totalorder %s97, %s99
      %p103 = scmp.eq.s32.totalorder %s21, 0
      %p104 = por %p102, %p103
      %p105 = scmp.ne.s32.totalorder %s97, %s99
      %p106 = scmp.eq.s32.totalorder %s26, 1
      %p107 = por %p105, %p106
      %p108 = scmp.ne.s32.totalorder %s99, %s100
      %p109 = scmp.eq.s32.totalorder %s26, 0
      %p110 = por %p108, %p109
      %p111 = scmp.ne.s32.totalorder %s99, %s100
      %p112 = scmp.eq.s32.totalorder %s27, 1
      %p113 = por %p111, %p112
      %p115 = scmp.ne.s32.totalorder %s100, %s114
      %p116 = scmp.eq.s32.totalorder %s27, 0
      %p117 = por %p115, %p116
      %s119 = sadd.s32 %s118, 1
      %p122 = scmp.eq.s32.totalorder %s21, 1
      %p123 = scmp.ne.s32.totalorder %s118, %s120
      %p124 = scmp.eq.s32.totalorder %s21, 0
      %p125 = por %p123, %p124
      %p126 = scmp.ne.s32.totalorder %s118, %s120
      %p127 = scmp.eq.s32.totalorder %s26, 1
      %p128 = por %p126, %p127
      %p129 = scmp.ne.s32.totalorder %s120, %s121
      %p130 = scmp.eq.s32.totalorder %s26, 0
      %p131 = por %p129, %p130
      %p132 = scmp.ne.s32.totalorder %s120, %s121
      %p133 = scmp.eq.s32.totalorder %s27, 1
      %p134 = por %p132, %p133
      %p136 = scmp.ne.s32.totalorder %s121, %s135
      %p137 = scmp.eq.s32.totalorder %s27, 0
      %p138 = por %p136, %p137
      %s140 = sadd.s32 %s139, 1
      %p143 = scmp.eq.s32.totalorder %s21, 1
      %p144 = scmp.ne.s32.totalorder %s139, %s141
      %p145 = scmp.eq.s32.totalorder %s21, 0
      %p146 = por %p144, %p145
      %p147 = scmp.ne.s32.totalorder %s139, %s141
      %p148 = scmp.eq.s32.totalorder %s26, 1
      %p149 = por %p147, %p148
      %p150 = scmp.ne.s32.totalorder %s141, %s142
      %p151 = scmp.eq.s32.totalorder %s26, 0
      %p152 = por %p150, %p151
      %p153 = scmp.ne.s32.totalorder %s141, %s142
      %p154 = scmp.eq.s32.totalorder %s27, 1
      %p155 = por %p153, %p154
      %p157 = scmp.ne.s32.totalorder %s142, %s156
      %p158 = scmp.eq.s32.totalorder %s27, 0
      %p159 = por %p157, %p158
      %s161 = sadd.s32 %s160, 1
      %p164 = scmp.eq.s32.totalorder %s21, 1
      %p165 = scmp.ne.s32.totalorder %s160, %s162
      %p166 = scmp.eq.s32.totalorder %s21, 0
      %p167 = por %p165, %p166
      %p168 = scmp.ne.s32.totalorder %s160, %s162
      %p169 = scmp.eq.s32.totalorder %s26, 1
      %p170 = por %p168, %p169
      %p171 = scmp.ne.s32.totalorder %s162, %s163
      %p172 = scmp.eq.s32.totalorder %s26, 0
      %p173 = por %p171, %p172
      %p174 = scmp.ne.s32.totalorder %s162, %s163
      %p175 = scmp.eq.s32.totalorder %s27, 1
      %p176 = por %p174, %p175
      %p178 = scmp.ne.s32.totalorder %s163, %s177
      %p179 = scmp.eq.s32.totalorder %s27, 0
      %p180 = por %p178, %p179
      %s181 = ssub.s32 %s21, %s28
      %p182 = scmp.eq.s32.totalorder %s181, 0
      %s184 = sadd.s32 %s183, 1
      %s185 = scalar_select %p182, %s183, %s184
      %p188 = pneg %p182
      %p189 = scmp.eq.s32.totalorder %s21, 1
      %p190 = por %p188, %p189
      %p191 = scmp.ne.s32.totalorder %s183, %s186
      %p192 = scmp.eq.s32.totalorder %s21, 0
      %p193 = por %p191, %p192
      %p194 = scmp.ne.s32.totalorder %s183, %s186
      %p195 = scmp.eq.s32.totalorder %s26, 1
      %p196 = por %p194, %p195
      %p197 = scmp.ne.s32.totalorder %s186, %s187
      %p198 = scmp.eq.s32.totalorder %s26, 0
      %p199 = por %p197, %p198
      %p200 = scmp.ne.s32.totalorder %s186, %s187
      %p201 = scmp.eq.s32.totalorder %s27, 1
      %p202 = por %p200, %p201
      %p204 = scmp.ne.s32.totalorder %s187, %s203
      %p205 = scmp.eq.s32.totalorder %s27, 0
      %p206 = por %p204, %p205
      %p207 = scmp.le.s32.totalorder 1, %s21
      %p208 = scmp.lt.s32.totalorder %s21, 3
      %p209 = pnand %p207, %p208
      %p210 = pneg %p209
      // Predicated region
      $region9: #{tpu_custom_call.1} parent=5 // pred_check
        _
      $region10: #{tpu_custom_call.1} parent=5 // pred_check_branch
        %212 = sbr.rel (%p209) target = $region12
      $region11: #{tpu_custom_call.1} parent=5 // pred_region
        %s213 = ssub.s32 %s21, 1
        // Predicated region
        $region13: #{tpu_custom_call.1} parent=11 // pred_check
          %p214 = pneg %p68
        $region14: #{tpu_custom_call.1} parent=11 // pred_check_branch
          %216 = sbr.rel (%p214) target = $region16
        $region15: #{tpu_custom_call.1} parent=11 // pred_region
          %s218 = ssub.s32 2048, 2048
          %219 = vsyncadd [#allocation6], %s218
          %s220 = sshll.u32 [#allocation5], 4
          %s221 = int_to_ptr.vmem [resolvable:$true] %s220
          %226 = dma.hbm_to_vmem [thread:$0]  %s1, 2048, %s221, [#allocation6], 128, 128, 8
        $region16: #{tpu_custom_call.1} parent=11 // pred_fallthru
          _
        // Predicated region
        $region17: #{tpu_custom_call.1} parent=11 // pred_check
          %p227 = pneg %p89
        $region18: #{tpu_custom_call.1} parent=11 // pred_check_branch
          %229 = sbr.rel (%p227) target = $region20
        $region19: #{tpu_custom_call.1} parent=11 // pred_region
          _
        $region20: #{tpu_custom_call.1} parent=11 // pred_fallthru
          _
        // Predicated region
        $region21: #{tpu_custom_call.1} parent=11 // pred_check
          %p230 = pneg %p110
        $region22: #{tpu_custom_call.1} parent=11 // pred_check_branch
          %232 = sbr.rel (%p230) target = $region24
        $region23: #{tpu_custom_call.1} parent=11 // pred_region
          %s234 = ssub.s32 2048, 2048
          %235 = vsyncadd [#allocation6], %s234
          %s236 = sshll.u32 [#allocation7], 4
          %s237 = int_to_ptr.vmem [resolvable:$true] %s236
          %242 = dma.hbm_to_vmem [thread:$0]  %s3, 2048, %s237, [#allocation6], 128, 128, 8
        $region24: #{tpu_custom_call.1} parent=11 // pred_fallthru
          _
        // Predicated region
        $region25: #{tpu_custom_call.1} parent=11 // pred_check
          %p243 = pneg %p131
        $region26: #{tpu_custom_call.1} parent=11 // pred_check_branch
          %245 = sbr.rel (%p243) target = $region28
        $region27: #{tpu_custom_call.1} parent=11 // pred_region
          _
        $region28: #{tpu_custom_call.1} parent=11 // pred_fallthru
          _
        // Predicated region
        $region29: #{tpu_custom_call.1} parent=11 // pred_check
          %p246 = pneg %p152
        $region30: #{tpu_custom_call.1} parent=11 // pred_check_branch
          %248 = sbr.rel (%p246) target = $region32
        $region31: #{tpu_custom_call.1} parent=11 // pred_region
          %s250 = ssub.s32 2048, 2048
          %251 = vsyncadd [#allocation9], %s250
          %s252 = sshll.u32 [#allocation8], 4
          %s253 = int_to_ptr.vmem [resolvable:$true] %s252
          %258 = dma.hbm_to_vmem [thread:$0]  %s5, 2048, %s253, [#allocation9], 128, 128, 8
        $region32: #{tpu_custom_call.1} parent=11 // pred_fallthru
          _
        // Predicated region
        $region33: #{tpu_custom_call.1} parent=11 // pred_check
          %p259 = pneg %p173
        $region34: #{tpu_custom_call.1} parent=11 // pred_check_branch
          %261 = sbr.rel (%p259) target = $region36
        $region35: #{tpu_custom_call.1} parent=11 // pred_region
          _
        $region36: #{tpu_custom_call.1} parent=11 // pred_fallthru
          _
      $region12: #{tpu_custom_call.1} parent=5 // pred_fallthru
        _
      %p262 = scmp.lt.s32.totalorder %s21, 2
      // Predicated region
      $region37: #{tpu_custom_call.1} parent=5 // pred_check
        %p263 = pneg %p262
      $region38: #{tpu_custom_call.1} parent=5 // pred_check_branch
        %265 = sbr.rel (%p263) target = $region40
      $region39: #{tpu_custom_call.1} parent=5 // pred_region
        // Predicated region
        $region41: #{tpu_custom_call.1} parent=39 // pred_check
          %p266 = pneg %p41
        $region42: #{tpu_custom_call.1} parent=39 // pred_check_branch
          %268 = sbr.rel (%p266) target = $region44
        $region43: #{tpu_custom_call.1} parent=39 // pred_region
          %s269 = sand.u32 %s31, 1
          %s270 = scalar_lea.sflag [#allocation3], %s269
          %s271 = sand.u32 %s31, 1
          %s272 = smul.addr %s271, 8
          %s273 = scalar_lea.vmem [#allocation2], %s272
          %s275 = ssub.s32 128, 128
          %276 = vsyncadd %s270, %s275
          %s277 = smul.addr %s21, 128
          %s278 = scalar_lea.hbm %s0, %s277
          %s280 = sshll.u32 %s273, 4
          %s281 = int_to_ptr.vmem [resolvable:$true] %s280
          %283 = dma.hbm_to_vmem [thread:$0]  %s278, 128, %s281, %s270
        $region44: #{tpu_custom_call.1} parent=39 // pred_fallthru
          _
      $region40: #{tpu_custom_call.1} parent=5 // pred_fallthru
        _
      %p284 = scmp.le.s32.totalorder 1, %s21
      %p285 = scmp.lt.s32.totalorder %s21, 3
      %p286 = pnand %p284, %p285
      %p287 = pneg %p286
      // Predicated region
      $region45: #{tpu_custom_call.1} parent=5 // pred_check
        _
      $region46: #{tpu_custom_call.1} parent=5 // pred_check_branch
        %289 = sbr.rel (%p286) target = $region48
      $region47: #{tpu_custom_call.1} parent=5 // pred_region
        %s290 = ssub.s32 %s21, 1
        %s291 = sand.u32 %s34, 1
        %s292 = scalar_lea.sflag [#allocation3], %s291
        %s293 = sand.u32 %s34, 1
        %s294 = smul.addr %s293, 8
        %s295 = scalar_lea.vmem [#allocation2], %s294
        // Predicated region
        $region49: #{tpu_custom_call.1} parent=47 // pred_check
          %p296 = pneg %p47
        $region50: #{tpu_custom_call.1} parent=47 // pred_check_branch
          %298 = sbr.rel (%p296) target = $region52
        $region51: #{tpu_custom_call.1} parent=47 // pred_region
          %299 = dma.done %s292, 128
        $region52: #{tpu_custom_call.1} parent=47 // pred_fallthru
          _
        // Predicated region
        $region53: #{tpu_custom_call.1} parent=47 // pred_check
          %p300 = pneg %p68
        $region54: #{tpu_custom_call.1} parent=47 // pred_check_branch
          %302 = sbr.rel (%p300) target = $region56
        $region55: #{tpu_custom_call.1} parent=47 // pred_region
          %303 = dma.done [#allocation6], 2048
        $region56: #{tpu_custom_call.1} parent=47 // pred_fallthru
          _
        // Predicated region
        $region57: #{tpu_custom_call.1} parent=47 // pred_check
          %p304 = pneg %p110
        $region58: #{tpu_custom_call.1} parent=47 // pred_check_branch
          %306 = sbr.rel (%p304) target = $region60
        $region59: #{tpu_custom_call.1} parent=47 // pred_region
          %307 = dma.done [#allocation6], 2048
        $region60: #{tpu_custom_call.1} parent=47 // pred_fallthru
          _
        // Predicated region
        $region61: #{tpu_custom_call.1} parent=47 // pred_check
          %p308 = pneg %p152
        $region62: #{tpu_custom_call.1} parent=47 // pred_check_branch
          %310 = sbr.rel (%p308) target = $region64
        $region63: #{tpu_custom_call.1} parent=47 // pred_region
          %311 = dma.done [#allocation9], 2048
        $region64: #{tpu_custom_call.1} parent=47 // pred_fallthru
          _
        %s312 = sand.u32 %s34, 1
        %s313 = scalar_lea.sflag [#allocation3], %s312
        %s314 = sand.u32 %s34, 1
        %s315 = smul.addr %s314, 8
        %s316 = scalar_lea.vmem [#allocation2], %s315
        %p317 = pneg %p47
        %p318 = pneg %p44
        %p319 = pneg %p68
        %p320 = pneg %p65
        %p321 = pneg %p89
        %p322 = pneg %p86
        %p323 = pneg %p110
        %p324 = pneg %p107
        %p325 = pneg %p131
        %p326 = pneg %p128
        %p327 = pneg %p152
        %p328 = pneg %p149
        %p329 = pneg %p173
        %p330 = pneg %p170
        %p331 = pneg %p199
        %p332 = pneg %p196
        %s333 = sand.u32 %s186, 1
        %s334 = scalar_lea.sflag [#allocation4], %s333
        %s335 = sand.u32 %s186, 1
        %s336 = smul.addr %s335, 8
        %s337 = scalar_lea.vmem [#allocation10], %s336
        %v338 = vld [vmem:[%s295] sm:$0xff]
        %v339 = vld [vmem:[#allocation5] sm:$0xff]
        %v340 = vld [vmem:[#allocation5 + $0x8] sm:$0xff]
        %v341 = vld [vmem:[#allocation5 + $0x10] sm:$0xff]
        %v342 = vld [vmem:[#allocation5 + $0x18] sm:$0xff]
        %v343 = vld [vmem:[#allocation5 + $0x20] sm:$0xff]
        %v344 = vld [vmem:[#allocation5 + $0x28] sm:$0xff]
        %v345 = vld [vmem:[#allocation5 + $0x30] sm:$0xff]
        %v346 = vld [vmem:[#allocation5 + $0x38] sm:$0xff]
        %v347 = vld [vmem:[#allocation5 + $0x40] sm:$0xff]
        %v348 = vld [vmem:[#allocation5 + $0x48] sm:$0xff]
        %v349 = vld [vmem:[#allocation5 + $0x50] sm:$0xff]
        %v350 = vld [vmem:[#allocation5 + $0x58] sm:$0xff]
        %v351 = vld [vmem:[#allocation5 + $0x60] sm:$0xff]
        %v352 = vld [vmem:[#allocation5 + $0x68] sm:$0xff]
        %v353 = vld [vmem:[#allocation5 + $0x70] sm:$0xff]
        %v354 = vld [vmem:[#allocation5 + $0x78] sm:$0xff]
        %v355 = vld [vmem:[%s2] sm:$0x1]
        %v357 = vlaneseq
        %v358 = vshrl.u32 %v357, 7
        %v359 = vsub.s32 0, %v358
        %v360 = vrot.slane %v355, %v359
        %362 = vmatprep.subr.mxu0 0.0
        %363 = vmatpush1.msra.mxu0 %v339
        %364 = vmatprep.subr.mxu0 0.0
        %365 = vmatpush1.msra.mxu0 %v340
        %366 = vmatprep.subr.mxu0 0.0
        %367 = vmatpush1.msra.mxu0 %v341
        %368 = vmatprep.subr.mxu0 0.0
        %369 = vmatpush1.msra.mxu0 %v342
        %370 = vmatprep.subr.mxu0 0.0
        %371 = vmatpush1.msra.mxu0 %v343
        %372 = vmatprep.subr.mxu0 0.0
        %373 = vmatpush1.msra.mxu0 %v344
        %374 = vmatprep.subr.mxu0 0.0
        %375 = vmatpush1.msra.mxu0 %v345
        %376 = vmatprep.subr.mxu0 0.0
        %377 = vmatpush1.msra.mxu0 %v346
        %378 = vmatprep.subr.mxu0 0.0
        %379 = vmatpush1.msra.mxu0 %v347
        %380 = vmatprep.subr.mxu0 0.0
        %381 = vmatpush1.msra.mxu0 %v348
        %382 = vmatprep.subr.mxu0 0.0
        %383 = vmatpush1.msra.mxu0 %v349
        %384 = vmatprep.subr.mxu0 0.0
        %385 = vmatpush1.msra.mxu0 %v350
        %386 = vmatprep.subr.mxu0 0.0
        %387 = vmatpush1.msra.mxu0 %v351
        %388 = vmatprep.subr.mxu0 0.0
        %389 = vmatpush1.msra.mxu0 %v352
        %390 = vmatprep.subr.mxu0 0.0
        %391 = vmatpush1.msra.mxu0 %v353
        %392 = vmatprep.subr.mxu0 0.0
        %393 = vmatpush1.msra.mxu0 %v354
        %394 = vmatprep.subr.mxu0 0.0
        %395 = vmatpush1.msra.mxu0 0.0
        %396 = vmatprep.subr.mxu0 0.0
        %397 = vmatpush1.msra.mxu0 0.0
        %398 = vmatprep.subr.mxu0 0.0
        %399 = vmatpush1.msra.mxu0 0.0
        %400 = vmatprep.subr.mxu0 0.0
        %401 = vmatpush1.msra.mxu0 0.0
        %402 = vmatprep.subr.mxu0 0.0
        %403 = vmatpush1.msra.mxu0 0.0
        %404 = vmatprep.subr.mxu0 0.0
        %405 = vmatpush1.msra.mxu0 0.0
        %406 = vmatprep.subr.mxu0 0.0
        %407 = vmatpush1.msra.mxu0 0.0
        %408 = vmatprep.subr.mxu0 0.0
        %409 = vmatpush1.msra.mxu0 0.0
        %410 = vmatprep.subr.mxu0 0.0
        %411 = vmatpush1.msra.mxu0 0.0
        %412 = vmatprep.subr.mxu0 0.0
        %413 = vmatpush1.msra.mxu0 0.0
        %414 = vmatprep.subr.mxu0 0.0
        %415 = vmatpush1.msra.mxu0 0.0
        %416 = vmatprep.subr.mxu0 0.0
        %417 = vmatpush1.msra.mxu0 0.0
        %418 = vmatprep.subr.mxu0 0.0
        %419 = vmatpush1.msra.mxu0 0.0
        %420 = vmatprep.subr.mxu0 0.0
        %421 = vmatpush1.msra.mxu0 0.0
        %422 = vmatprep.subr.mxu0 0.0
        %423 = vmatpush1.msra.mxu0 0.0
        %424 = vmatprep.subr.mxu0 0.0
        %425 = vmatpush1.msra.mxu0 0.0
        %426 = vmatprep.mubr.f32.mxu0 0.0
        %427 = vmatmul.mubr.f32.gmra.mrb[0].mxu0 %v338
        %v428 = vpop.f32.mrb[0].mxu0
        %v429 = vadd.f32 %v360, %v428
        %v430 = vpop.f32.mrb[0].mxu0
        %431 = vdwg.mxu0
        %v432 = vmax.f32 %v429, 0.0
        %v433 = vld [vmem:[#allocation7] sm:$0xff]
        %v434 = vld [vmem:[#allocation7 + $0x8] sm:$0xff]
        %v435 = vld [vmem:[#allocation7 + $0x10] sm:$0xff]
        %v436 = vld [vmem:[#allocation7 + $0x18] sm:$0xff]
        %v437 = vld [vmem:[#allocation7 + $0x20] sm:$0xff]
        %v438 = vld [vmem:[#allocation7 + $0x28] sm:$0xff]
        %v439 = vld [vmem:[#allocation7 + $0x30] sm:$0xff]
        %v440 = vld [vmem:[#allocation7 + $0x38] sm:$0xff]
        %v441 = vld [vmem:[#allocation7 + $0x40] sm:$0xff]
        %v442 = vld [vmem:[#allocation7 + $0x48] sm:$0xff]
        %v443 = vld [vmem:[#allocation7 + $0x50] sm:$0xff]
        %v444 = vld [vmem:[#allocation7 + $0x58] sm:$0xff]
        %v445 = vld [vmem:[#allocation7 + $0x60] sm:$0xff]
        %v446 = vld [vmem:[#allocation7 + $0x68] sm:$0xff]
        %v447 = vld [vmem:[#allocation7 + $0x70] sm:$0xff]
        %v448 = vld [vmem:[#allocation7 + $0x78] sm:$0xff]
        %v449 = vld [vmem:[%s4] sm:$0x1]
        %v451 = vlaneseq
        %v452 = vshrl.u32 %v451, 7
        %v453 = vsub.s32 0, %v452
        %v454 = vrot.slane %v449, %v453
        %456 = vmatprep.subr.mxu0 0.0
        %457 = vmatpush1.msra.mxu0 %v433
        %458 = vmatprep.subr.mxu0 0.0
        %459 = vmatpush1.msra.mxu0 %v434
        %460 = vmatprep.subr.mxu0 0.0
        %461 = vmatpush1.msra.mxu0 %v435
        %462 = vmatprep.subr.mxu0 0.0
        %463 = vmatpush1.msra.mxu0 %v436
        %464 = vmatprep.subr.mxu0 0.0
        %465 = vmatpush1.msra.mxu0 %v437
        %466 = vmatprep.subr.mxu0 0.0
        %467 = vmatpush1.msra.mxu0 %v438
        %468 = vmatprep.subr.mxu0 0.0
        %469 = vmatpush1.msra.mxu0 %v439
        %470 = vmatprep.subr.mxu0 0.0
        %471 = vmatpush1.msra.mxu0 %v440
        %472 = vmatprep.subr.mxu0 0.0
        %473 = vmatpush1.msra.mxu0 %v441
        %474 = vmatprep.subr.mxu0 0.0
        %475 = vmatpush1.msra.mxu0 %v442
        %476 = vmatprep.subr.mxu0 0.0
        %477 = vmatpush1.msra.mxu0 %v443
        %478 = vmatprep.subr.mxu0 0.0
        %479 = vmatpush1.msra.mxu0 %v444
        %480 = vmatprep.subr.mxu0 0.0
        %481 = vmatpush1.msra.mxu0 %v445
        %482 = vmatprep.subr.mxu0 0.0
        %483 = vmatpush1.msra.mxu0 %v446
        %484 = vmatprep.subr.mxu0 0.0
        %485 = vmatpush1.msra.mxu0 %v447
        %486 = vmatprep.subr.mxu0 0.0
        %487 = vmatpush1.msra.mxu0 %v448
        %488 = vmatprep.subr.mxu0 0.0
        %489 = vmatpush1.msra.mxu0 0.0
        %490 = vmatprep.subr.mxu0 0.0
        %491 = vmatpush1.msra.mxu0 0.0
        %492 = vmatprep.subr.mxu0 0.0
        %493 = vmatpush1.msra.mxu0 0.0
        %494 = vmatprep.subr.mxu0 0.0
        %495 = vmatpush1.msra.mxu0 0.0
        %496 = vmatprep.subr.mxu0 0.0
        %497 = vmatpush1.msra.mxu0 0.0
        %498 = vmatprep.subr.mxu0 0.0
        %499 = vmatpush1.msra.mxu0 0.0
        %500 = vmatprep.subr.mxu0 0.0
        %501 = vmatpush1.msra.mxu0 0.0
        %502 = vmatprep.subr.mxu0 0.0
        %503 = vmatpush1.msra.mxu0 0.0
        %504 = vmatprep.subr.mxu0 0.0
        %505 = vmatpush1.msra.mxu0 0.0
        %506 = vmatprep.subr.mxu0 0.0
        %507 = vmatpush1.msra.mxu0 0.0
        %508 = vmatprep.subr.mxu0 0.0
        %509 = vmatpush1.msra.mxu0 0.0
        %510 = vmatprep.subr.mxu0 0.0
        %511 = vmatpush1.msra.mxu0 0.0
        %512 = vmatprep.subr.mxu0 0.0
        %513 = vmatpush1.msra.mxu0 0.0
        %514 = vmatprep.subr.mxu0 0.0
        %515 = vmatpush1.msra.mxu0 0.0
        %516 = vmatprep.subr.mxu0 0.0
        %517 = vmatpush1.msra.mxu0 0.0
        %518 = vmatprep.subr.mxu0 0.0
        %519 = vmatpush1.msra.mxu0 0.0
        %520 = vmatprep.mubr.f32.mxu0 0.0
        %521 = vmatmul.mubr.f32.gmra.mrb[0].mxu0 %v432
        %v522 = vpop.f32.mrb[0].mxu0
        %v523 = vadd.f32 %v454, %v522
        %v524 = vpop.f32.mrb[0].mxu0
        %525 = vdwg.mxu0
        %v526 = vmax.f32 %v523, 0.0
        %v527 = vld [vmem:[#allocation8] sm:$0xff]
        %v528 = vld [vmem:[#allocation8 + $0x8] sm:$0xff]
        %v529 = vld [vmem:[#allocation8 + $0x10] sm:$0xff]
        %v530 = vld [vmem:[#allocation8 + $0x18] sm:$0xff]
        %v531 = vld [vmem:[#allocation8 + $0x20] sm:$0xff]
        %v532 = vld [vmem:[#allocation8 + $0x28] sm:$0xff]
        %v533 = vld [vmem:[#allocation8 + $0x30] sm:$0xff]
        %v534 = vld [vmem:[#allocation8 + $0x38] sm:$0xff]
        %v535 = vld [vmem:[#allocation8 + $0x40] sm:$0xff]
        %v536 = vld [vmem:[#allocation8 + $0x48] sm:$0xff]
        %v537 = vld [vmem:[#allocation8 + $0x50] sm:$0xff]
        %v538 = vld [vmem:[#allocation8 + $0x58] sm:$0xff]
        %v539 = vld [vmem:[#allocation8 + $0x60] sm:$0xff]
        %v540 = vld [vmem:[#allocation8 + $0x68] sm:$0xff]
        %v541 = vld [vmem:[#allocation8 + $0x70] sm:$0xff]
        %v542 = vld [vmem:[#allocation8 + $0x78] sm:$0xff]
        %v543 = vld [vmem:[%s6] sm:$0x1]
        %v545 = vlaneseq
        %v546 = vshrl.u32 %v545, 7
        %v547 = vsub.s32 0, %v546
        %v548 = vrot.slane %v543, %v547
        %550 = vmatprep.subr.mxu0 0.0
        %551 = vmatpush1.msra.mxu0 %v527
        %552 = vmatprep.subr.mxu0 0.0
        %553 = vmatpush1.msra.mxu0 %v528
        %554 = vmatprep.subr.mxu0 0.0
        %555 = vmatpush1.msra.mxu0 %v529
        %556 = vmatprep.subr.mxu0 0.0
        %557 = vmatpush1.msra.mxu0 %v530
        %558 = vmatprep.subr.mxu0 0.0
        %559 = vmatpush1.msra.mxu0 %v531
        %560 = vmatprep.subr.mxu0 0.0
        %561 = vmatpush1.msra.mxu0 %v532
        %562 = vmatprep.subr.mxu0 0.0
        %563 = vmatpush1.msra.mxu0 %v533
        %564 = vmatprep.subr.mxu0 0.0
        %565 = vmatpush1.msra.mxu0 %v534
        %566 = vmatprep.subr.mxu0 0.0
        %567 = vmatpush1.msra.mxu0 %v535
        %568 = vmatprep.subr.mxu0 0.0
        %569 = vmatpush1.msra.mxu0 %v536
        %570 = vmatprep.subr.mxu0 0.0
        %571 = vmatpush1.msra.mxu0 %v537
        %572 = vmatprep.subr.mxu0 0.0
        %573 = vmatpush1.msra.mxu0 %v538
        %574 = vmatprep.subr.mxu0 0.0
        %575 = vmatpush1.msra.mxu0 %v539
        %576 = vmatprep.subr.mxu0 0.0
        %577 = vmatpush1.msra.mxu0 %v540
        %578 = vmatprep.subr.mxu0 0.0
        %579 = vmatpush1.msra.mxu0 %v541
        %580 = vmatprep.subr.mxu0 0.0
        %581 = vmatpush1.msra.mxu0 %v542
        %582 = vmatprep.subr.mxu0 0.0
        %583 = vmatpush1.msra.mxu0 0.0
        %584 = vmatprep.subr.mxu0 0.0
        %585 = vmatpush1.msra.mxu0 0.0
        %586 = vmatprep.subr.mxu0 0.0
        %587 = vmatpush1.msra.mxu0 0.0
        %588 = vmatprep.subr.mxu0 0.0
        %589 = vmatpush1.msra.mxu0 0.0
        %590 = vmatprep.subr.mxu0 0.0
        %591 = vmatpush1.msra.mxu0 0.0
        %592 = vmatprep.subr.mxu0 0.0
        %593 = vmatpush1.msra.mxu0 0.0
        %594 = vmatprep.subr.mxu0 0.0
        %595 = vmatpush1.msra.mxu0 0.0
        %596 = vmatprep.subr.mxu0 0.0
        %597 = vmatpush1.msra.mxu0 0.0
        %598 = vmatprep.subr.mxu0 0.0
        %599 = vmatpush1.msra.mxu0 0.0
        %600 = vmatprep.subr.mxu0 0.0
        %601 = vmatpush1.msra.mxu0 0.0
        %602 = vmatprep.subr.mxu0 0.0
        %603 = vmatpush1.msra.mxu0 0.0
        %604 = vmatprep.subr.mxu0 0.0
        %605 = vmatpush1.msra.mxu0 0.0
        %606 = vmatprep.subr.mxu0 0.0
        %607 = vmatpush1.msra.mxu0 0.0
        %608 = vmatprep.subr.mxu0 0.0
        %609 = vmatpush1.msra.mxu0 0.0
        %610 = vmatprep.subr.mxu0 0.0
        %611 = vmatpush1.msra.mxu0 0.0
        %612 = vmatprep.subr.mxu0 0.0
        %613 = vmatpush1.msra.mxu0 0.0
        %614 = vmatprep.mubr.f32.mxu0 0.0
        %615 = vmatmul.mubr.f32.gmra.mrb[0].mxu0 %v526
        %v616 = vpop.f32.mrb[0].mxu0
        %v617 = vadd.f32 %v548, %v616
        %v618 = vpop.f32.mrb[0].mxu0
        %619 = vdwg.mxu0
        %v620 = vmax.f32 %v617, 0.0
        %621 = vst [vmem:[%s337] sm:$0xff] %v620
        %s622 = sand.u32 %s186, 1
        %s623 = scalar_lea.sflag [#allocation4], %s622
        %s624 = sand.u32 %s186, 1
        %s625 = smul.addr %s624, 8
        %s626 = scalar_lea.vmem [#allocation10], %s625
        // Predicated region
        $region65: #{tpu_custom_call.1} parent=47 // pred_check
          %p627 = pneg %p196
        $region66: #{tpu_custom_call.1} parent=47 // pred_check_branch
          %629 = sbr.rel (%p627) target = $region68
        $region67: #{tpu_custom_call.1} parent=47 // pred_region
          %s631 = ssub.s32 128, 128
          %632 = vsyncadd %s623, %s631
          %s633 = smul.addr %s26, 128
          %s634 = scalar_lea.hbm %s7, %s633
          %s636 = sshll.u32 %s626, 4
          %s637 = int_to_ptr.vmem [resolvable:$true] %s636
          %639 = dma.vmem_to_hbm [thread:$0]  %s637, 128, %s634, %s623
        $region68: #{tpu_custom_call.1} parent=47 // pred_fallthru
          _
      $region48: #{tpu_custom_call.1} parent=5 // pred_fallthru
        _
      %p640 = scmp.le.s32.totalorder 2, %s21
      // Predicated region
      $region69: #{tpu_custom_call.1} parent=5 // pred_check
        %p641 = pneg %p640
      $region70: #{tpu_custom_call.1} parent=5 // pred_check_branch
        %643 = sbr.rel (%p641) target = $region72
      $region71: #{tpu_custom_call.1} parent=5 // pred_region
        %s644 = ssub.s32 %s21, 2
        // Predicated region
        $region73: #{tpu_custom_call.1} parent=71 // pred_check
          %p645 = pneg %p202
        $region74: #{tpu_custom_call.1} parent=71 // pred_check_branch
          %647 = sbr.rel (%p645) target = $region76
        $region75: #{tpu_custom_call.1} parent=71 // pred_region
          %s648 = sand.u32 %s187, 1
          %s649 = scalar_lea.sflag [#allocation4], %s648
          %s650 = sand.u32 %s187, 1
          %s651 = smul.addr %s650, 8
          %s652 = scalar_lea.vmem [#allocation10], %s651
          %653 = dma.done %s649, 128
        $region76: #{tpu_custom_call.1} parent=71 // pred_fallthru
          _
      $region72: #{tpu_custom_call.1} parent=5 // pred_fallthru
        _
    $region6: #{tpu_custom_call.1} parent=1 // loop_footer
      %s25 = sadd.s32 1, %s21
    $region7: #{tpu_custom_call.1} parent=1 // loop_footer_branch
      %20 = sbr.rel target = $region3
    $region8: #{tpu_custom_call.1} parent=1 // loop_exit
      _
    %654 = vsyncpa [#allocation3], 1
    %s655 = scalar_lea.sflag [#allocation3], 1
    %656 = vsyncpa %s655, 1
    %657 = vsyncpa [#allocation6], 1
    %658 = vsyncpa [#allocation9], 1
    %659 = vsyncpa [#allocation4], 1
    %s660 = scalar_lea.sflag [#allocation4], 1
    %661 = vsyncpa %s660, 1

// kernel: tpu_custom_call.1
$region0: #{tpu_custom_call.1}
  #allocation0 [shape = 'u32[]', space=smem, size = 0x4, offset = 0x4, fixed_abs, tag = 'smem constant byte address 0x4 - core index']
  #allocation1 [shape = 'u32[144,128]{1,0:T(1,128)}', space=vmem, size = 0x12000, scoped, tag = 'internal scratch']
  %s0 = inlined_call_operand.hbm [shape: f32[16,128], index: 0, kind: input, shape index: {}]
  %s1 = inlined_call_operand.hbm [shape: f32[128,128], index: 1, kind: input, shape index: {}]
  %s2 = inlined_call_operand.vmem [shape: f32[1,128], index: 2, kind: input, shape index: {}]
  %s3 = inlined_call_operand.hbm [shape: f32[128,128], index: 3, kind: input, shape index: {}]
  %s4 = inlined_call_operand.vmem [shape: f32[1,128], index: 4, kind: input, shape index: {}]
  %s5 = inlined_call_operand.hbm [shape: f32[128,128], index: 5, kind: input, shape index: {}]
  %s6 = inlined_call_operand.vmem [shape: f32[1,128], index: 6, kind: input, shape index: {}]
  %s7 = inlined_call_operand.hbm [shape: f32[16,128], index: 7, kind: output, shape index: {}]
  %s8 = sld [smem:[#allocation0]]
  $region77: #{tpu_custom_call.1} parent=0
    _
  %s10 = ssub.s32 1, %s8
  %s11 = scalar_select 0, %s10, %s8
  $region1: #{tpu_custom_call.1} parent=0
    #allocation2 [shape = 'u8[8192]{0}', space=vmem, size = 0x2000, scoped, tag = 'input window, operand 0']
    #allocation3 [shape = 's32[2]{0}', space=sflag, size = 0x8, scoped, tag = 'scoped memory for tpu_custom_call.1']
    #allocation4 [shape = 's32[2]{0}', space=sflag, size = 0x8, scoped, tag = 'scoped memory for tpu_custom_call.1']
    #allocation5 [shape = 'u8[65536]{0}', space=vmem, size = 0x10000, scoped, tag = 'input window, operand 1, single buffered']
    #allocation6 [shape = 's32[1]{0}', space=sflag, size = 0x4, scoped, tag = 'scoped memory for tpu_custom_call.1']
    #allocation7 [shape = 'u8[65536]{0}', space=vmem, size = 0x10000, scoped, tag = 'input window, operand 3, single buffered']
    #allocation8 [shape = 'u8[65536]{0}', space=vmem, size = 0x10000, scoped, tag = 'input window, operand 5, single buffered']
    #allocation9 [shape = 's32[1]{0}', space=sflag, size = 0x4, scoped, tag = 'scoped memory for tpu_custom_call.1']
    #allocation10 [shape = 'u8[8192]{0}', space=vmem, size = 0x2000, scoped, tag = 'output window, operand 0']
    %12 = vsyncpa [#allocation3], 0
    %s13 = scalar_lea.sflag [#allocation3], 1
    %14 = vsyncpa %s13, 0
    %15 = vsyncpa [#allocation6], 0
    %16 = vsyncpa [#allocation9], 0
    %17 = vsyncpa [#allocation4], 0
    %s18 = scalar_lea.sflag [#allocation4], 1
    %19 = vsyncpa %s18, 0
    loop: start=0, step=1, limit=4
    $region2: #{tpu_custom_call.1} parent=1 // loop_pre_header
      _
    $region3: #{tpu_custom_call.1} parent=1 // loop_header
      %s21 = sphi 0, %s25
      %p22 = scmp.ge.s32.totalorder %s21, 4
      %s31 = sphi 0, %s33
      %s34 = sphi 0, %s31
      %s35 = sphi 0, %s34
      %s51 = sphi 0, %s35
      %s55 = sphi 0, %s55
      %s57 = sphi 0, %s55
      %s58 = sphi 0, %s57
      %s72 = sphi 0, %s58
      %s76 = sphi 0, %s76
      %s78 = sphi 0, %s76
      %s79 = sphi 0, %s78
      %s93 = sphi 0, %s79
      %s97 = sphi 0, %s97
      %s99 = sphi 0, %s97
      %s100 = sphi 0, %s99
      %s114 = sphi 0, %s100
      %s118 = sphi 0, %s118
      %s120 = sphi 0, %s118
      %s121 = sphi 0, %s120
      %s135 = sphi 0, %s121
      %s139 = sphi 0, %s139
      %s141 = sphi 0, %s139
      %s142 = sphi 0, %s141
      %s156 = sphi 0, %s142
      %s160 = sphi 0, %s160
      %s162 = sphi 0, %s160
      %s163 = sphi 0, %s162
      %s177 = sphi 0, %s163
      %s183 = sphi 0, %s185
      %s186 = sphi 0, %s183
      %s187 = sphi 0, %s186
      %s203 = sphi 0, %s187
    $region4: #{tpu_custom_call.1} parent=1 // loop_header_branch
      %24 = sbr.rel (%p22) target = $region8
    $region5: #{tpu_custom_call.1} parent=1 // loop_body
      %s26 = ssub.s32 %s21, 1
      %s27 = ssub.s32 %s21, 2
      %s28 = sadd.s32 %s21, 1
      %s29 = ssub.s32 %s21, %s28
      %p30 = scmp.eq.s32.totalorder %s29, 0
      %s32 = sadd.s32 %s31, 1
      %s33 = scalar_select %p30, %s31, %s32
      %p36 = pneg %p30
      %p37 = scmp.eq.s32.totalorder %s21, 1
      %p38 = por %p36, %p37
      %p39 = scmp.ne.s32.totalorder %s31, %s34
      %p40 = scmp.eq.s32.totalorder %s21, 0
      %p41 = por %p39, %p40
      %p42 = scmp.ne.s32.totalorder %s31, %s34
      %p43 = scmp.eq.s32.totalorder %s26, 1
      %p44 = por %p42, %p43
      %p45 = scmp.ne.s32.totalorder %s34, %s35
      %p46 = scmp.eq.s32.totalorder %s26, 0
      %p47 = por %p45, %p46
      %p48 = scmp.ne.s32.totalorder %s34, %s35
      %p49 = scmp.eq.s32.totalorder %s27, 1
      %p50 = por %p48, %p49
      %p52 = scmp.ne.s32.totalorder %s35, %s51
      %p53 = scmp.eq.s32.totalorder %s27, 0
      %p54 = por %p52, %p53
      %s56 = sadd.s32 %s55, 1
      %p59 = scmp.eq.s32.totalorder %s21, 1
      %p60 = scmp.ne.s32.totalorder %s55, %s57
      %p61 = scmp.eq.s32.totalorder %s21, 0
      %p62 = por %p60, %p61
      %p63 = scmp.ne.s32.totalorder %s55, %s57
      %p64 = scmp.eq.s32.totalorder %s26, 1
      %p65 = por %p63, %p64
      %p66 = scmp.ne.s32.totalorder %s57, %s58
      %p67 = scmp.eq.s32.totalorder %s26, 0
      %p68 = por %p66, %p67
      %p69 = scmp.ne.s32.totalorder %s57, %s58
      %p70 = scmp.eq.s32.totalorder %s27, 1
      %p71 = por %p69, %p70
      %p73 = scmp.ne.s32.totalorder %s58, %s72
      %p74 = scmp.eq.s32.totalorder %s27, 0
      %p75 = por %p73, %p74
      %s77 = sadd.s32 %s76, 1
      %p80 = scmp.eq.s32.totalorder %s21, 1
      %p81 = scmp.ne.s32.totalorder %s76, %s78
      %p82 = scmp.eq.s32.totalorder %s21, 0
      %p83 = por %p81, %p82
      %p84 = scmp.ne.s32.totalorder %s76, %s78
      %p85 = scmp.eq.s32.totalorder %s26, 1
      %p86 = por %p84, %p85
      %p87 = scmp.ne.s32.totalorder %s78, %s79
      %p88 = scmp.eq.s32.totalorder %s26, 0
      %p89 = por %p87, %p88
      %p90 = scmp.ne.s32.totalorder %s78, %s79
      %p91 = scmp.eq.s32.totalorder %s27, 1
      %p92 = por %p90, %p91
      %p94 = scmp.ne.s32.totalorder %s79, %s93
      %p95 = scmp.eq.s32.totalorder %s27, 0
      %p96 = por %p94, %p95
      %s98 = sadd.s32 %s97, 1
      %p101 = scmp.eq.s32.totalorder %s21, 1
      %p102 = scmp.ne.s32.totalorder %s97, %s99
      %p103 = scmp.eq.s32.totalorder %s21, 0
      %p104 = por %p102, %p103
      %p105 = scmp.ne.s32.totalorder %s97, %s99
      %p106 = scmp.eq.s32.totalorder %s26, 1
      %p107 = por %p105, %p106
      %p108 = scmp.ne.s32.totalorder %s99, %s100
      %p109 = scmp.eq.s32.totalorder %s26, 0
      %p110 = por %p108, %p109
      %p111 = scmp.ne.s32.totalorder %s99, %s100
      %p112 = scmp.eq.s32.totalorder %s27, 1
      %p113 = por %p111, %p112
      %p115 = scmp.ne.s32.totalorder %s100, %s114
      %p116 = scmp.eq.s32.totalorder %s27, 0
      %p117 = por %p115, %p116
      %s119 = sadd.s32 %s118, 1
      %p122 = scmp.eq.s32.totalorder %s21, 1
      %p123 = scmp.ne.s32.totalorder %s118, %s120
      %p124 = scmp.eq.s32.totalorder %s21, 0
      %p125 = por %p123, %p124
      %p126 = scmp.ne.s32.totalorder %s118, %s120
      %p127 = scmp.eq.s32.totalorder %s26, 1
      %p128 = por %p126, %p127
      %p129 = scmp.ne.s32.totalorder %s120, %s121
      %p130 = scmp.eq.s32.totalorder %s26, 0
      %p131 = por %p129, %p130
      %p132 = scmp.ne.s32.totalorder %s120, %s121
      %p133 = scmp.eq.s32.totalorder %s27, 1
      %p134 = por %p132, %p133
      %p136 = scmp.ne.s32.totalorder %s121, %s135
      %p137 = scmp.eq.s32.totalorder %s27, 0
      %p138 = por %p136, %p137
      %s140 = sadd.s32 %s139, 1
      %p143 = scmp.eq.s32.totalorder %s21, 1
      %p144 = scmp.ne.s32.totalorder %s139, %s141
      %p145 = scmp.eq.s32.totalorder %s21, 0
      %p146 = por %p144, %p145
      %p147 = scmp.ne.s32.totalorder %s139, %s141
      %p148 = scmp.eq.s32.totalorder %s26, 1
      %p149 = por %p147, %p148
      %p150 = scmp.ne.s32.totalorder %s141, %s142
      %p151 = scmp.eq.s32.totalorder %s26, 0
      %p152 = por %p150, %p151
      %p153 = scmp.ne.s32.totalorder %s141, %s142
      %p154 = scmp.eq.s32.totalorder %s27, 1
      %p155 = por %p153, %p154
      %p157 = scmp.ne.s32.totalorder %s142, %s156
      %p158 = scmp.eq.s32.totalorder %s27, 0
      %p159 = por %p157, %p158
      %s161 = sadd.s32 %s160, 1
      %p164 = scmp.eq.s32.totalorder %s21, 1
      %p165 = scmp.ne.s32.totalorder %s160, %s162
      %p166 = scmp.eq.s32.totalorder %s21, 0
      %p167 = por %p165, %p166
      %p168 = scmp.ne.s32.totalorder %s160, %s162
      %p169 = scmp.eq.s32.totalorder %s26, 1
      %p170 = por %p168, %p169
      %p171 = scmp.ne.s32.totalorder %s162, %s163
      %p172 = scmp.eq.s32.totalorder %s26, 0
      %p173 = por %p171, %p172
      %p174 = scmp.ne.s32.totalorder %s162, %s163
      %p175 = scmp.eq.s32.totalorder %s27, 1
      %p176 = por %p174, %p175
      %p178 = scmp.ne.s32.totalorder %s163, %s177
      %p179 = scmp.eq.s32.totalorder %s27, 0
      %p180 = por %p178, %p179
      %s181 = ssub.s32 %s21, %s28
      %p182 = scmp.eq.s32.totalorder %s181, 0
      %s184 = sadd.s32 %s183, 1
      %s185 = scalar_select %p182, %s183, %s184
      %p188 = pneg %p182
      %p189 = scmp.eq.s32.totalorder %s21, 1
      %p190 = por %p188, %p189
      %p191 = scmp.ne.s32.totalorder %s183, %s186
      %p192 = scmp.eq.s32.totalorder %s21, 0
      %p193 = por %p191, %p192
      %p194 = scmp.ne.s32.totalorder %s183, %s186
      %p195 = scmp.eq.s32.totalorder %s26, 1
      %p196 = por %p194, %p195
      %p197 = scmp.ne.s32.totalorder %s186, %s187
      %p198 = scmp.eq.s32.totalorder %s26, 0
      %p199 = por %p197, %p198
      %p200 = scmp.ne.s32.totalorder %s186, %s187
      %p201 = scmp.eq.s32.totalorder %s27, 1
      %p202 = por %p200, %p201
      %p204 = scmp.ne.s32.totalorder %s187, %s203
      %p205 = scmp.eq.s32.totalorder %s27, 0
      %p206 = por %p204, %p205
      %p207 = scmp.le.s32.totalorder 1, %s21
      %p208 = scmp.lt.s32.totalorder %s21, 3
      %p209 = pnand %p207, %p208
      %p210 = pneg %p209
      // Predicated region
      $region9: #{tpu_custom_call.1} parent=5 // pred_check
        _
      $region10: #{tpu_custom_call.1} parent=5 // pred_check_branch
        %212 = sbr.rel (%p209) target = $region12
      $region11: #{tpu_custom_call.1} parent=5 // pred_region
        %s213 = ssub.s32 %s21, 1
        // Predicated region
        $region13: #{tpu_custom_call.1} parent=11 // pred_check
          %p214 = pneg %p68
        $region14: #{tpu_custom_call.1} parent=11 // pred_check_branch
          %216 = sbr.rel (%p214) target = $region16
        $region15: #{tpu_custom_call.1} parent=11 // pred_region
          %s218 = ssub.s32 2048, 2048
          %219 = vsyncadd [#allocation6], %s218
          %s220 = sshll.u32 [#allocation5], 4
          %s221 = int_to_ptr.vmem [resolvable:$true] %s220
          %226 = dma.hbm_to_vmem [thread:$0]  %s1, 2048, %s221, [#allocation6], 128, 128, 8
        $region16: #{tpu_custom_call.1} parent=11 // pred_fallthru
          _
        // Predicated region
        $region17: #{tpu_custom_call.1} parent=11 // pred_check
          %p227 = pneg %p89
        $region18: #{tpu_custom_call.1} parent=11 // pred_check_branch
          %229 = sbr.rel (%p227) target = $region20
        $region19: #{tpu_custom_call.1} parent=11 // pred_region
          _
        $region20: #{tpu_custom_call.1} parent=11 // pred_fallthru
          _
        // Predicated region
        $region21: #{tpu_custom_call.1} parent=11 // pred_check
          %p230 = pneg %p110
        $region22: #{tpu_custom_call.1} parent=11 // pred_check_branch
          %232 = sbr.rel (%p230) target = $region24
        $region23: #{tpu_custom_call.1} parent=11 // pred_region
          %s234 = ssub.s32 2048, 2048
          %235 = vsyncadd [#allocation6], %s234
          %s236 = sshll.u32 [#allocation7], 4
          %s237 = int_to_ptr.vmem [resolvable:$true] %s236
          %242 = dma.hbm_to_vmem [thread:$0]  %s3, 2048, %s237, [#allocation6], 128, 128, 8
        $region24: #{tpu_custom_call.1} parent=11 // pred_fallthru
          _
        // Predicated region
        $region25: #{tpu_custom_call.1} parent=11 // pred_check
          %p243 = pneg %p131
        $region26: #{tpu_custom_call.1} parent=11 // pred_check_branch
          %245 = sbr.rel (%p243) target = $region28
        $region27: #{tpu_custom_call.1} parent=11 // pred_region
          _
        $region28: #{tpu_custom_call.1} parent=11 // pred_fallthru
          _
        // Predicated region
        $region29: #{tpu_custom_call.1} parent=11 // pred_check
          %p246 = pneg %p152
        $region30: #{tpu_custom_call.1} parent=11 // pred_check_branch
          %248 = sbr.rel (%p246) target = $region32
        $region31: #{tpu_custom_call.1} parent=11 // pred_region
          %s250 = ssub.s32 2048, 2048
          %251 = vsyncadd [#allocation9], %s250
          %s252 = sshll.u32 [#allocation8], 4
          %s253 = int_to_ptr.vmem [resolvable:$true] %s252
          %258 = dma.hbm_to_vmem [thread:$0]  %s5, 2048, %s253, [#allocation9], 128, 128, 8
        $region32: #{tpu_custom_call.1} parent=11 // pred_fallthru
          _
        // Predicated region
        $region33: #{tpu_custom_call.1} parent=11 // pred_check
          %p259 = pneg %p173
        $region34: #{tpu_custom_call.1} parent=11 // pred_check_branch
          %261 = sbr.rel (%p259) target = $region36
        $region35: #{tpu_custom_call.1} parent=11 // pred_region
          _
        $region36: #{tpu_custom_call.1} parent=11 // pred_fallthru
          _
      $region12: #{tpu_custom_call.1} parent=5 // pred_fallthru
        _
      %p262 = scmp.lt.s32.totalorder %s21, 2
      // Predicated region
      $region37: #{tpu_custom_call.1} parent=5 // pred_check
        %p263 = pneg %p262
      $region38: #{tpu_custom_call.1} parent=5 // pred_check_branch
        %265 = sbr.rel (%p263) target = $region40
      $region39: #{tpu_custom_call.1} parent=5 // pred_region
        // Predicated region
        $region41: #{tpu_custom_call.1} parent=39 // pred_check
          %p266 = pneg %p41
        $region42: #{tpu_custom_call.1} parent=39 // pred_check_branch
          %268 = sbr.rel (%p266) target = $region44
        $region43: #{tpu_custom_call.1} parent=39 // pred_region
          %s269 = sand.u32 %s31, 1
          %s270 = scalar_lea.sflag [#allocation3], %s269
          %s271 = sand.u32 %s31, 1
          %s272 = smul.addr %s271, 8
          %s273 = scalar_lea.vmem [#allocation2], %s272
          %s275 = ssub.s32 128, 128
          %276 = vsyncadd %s270, %s275
          %s277 = smul.addr %s21, 128
          %s278 = scalar_lea.hbm %s0, %s277
          %s280 = sshll.u32 %s273, 4
          %s281 = int_to_ptr.vmem [resolvable:$true] %s280
          %283 = dma.hbm_to_vmem [thread:$0]  %s278, 128, %s281, %s270
        $region44: #{tpu_custom_call.1} parent=39 // pred_fallthru
          _
      $region40: #{tpu_custom_call.1} parent=5 // pred_fallthru
        _
      %p284 = scmp.le.s32.totalorder 1, %s21
      %p285 = scmp.lt.s32.totalorder %s21, 3
      %p286 = pnand %p284, %p285
      %p287 = pneg %p286
      // Predicated region
      $region45: #{tpu_custom_call.1} parent=5 // pred_check
        _
      $region46: #{tpu_custom_call.1} parent=5 // pred_check_branch
        %289 = sbr.rel (%p286) target = $region48
      $region47: #{tpu_custom_call.1} parent=5 // pred_region
        %s290 = ssub.s32 %s21, 1
        %s291 = sand.u32 %s34, 1
        %s292 = scalar_lea.sflag [#allocation3], %s291
        %s293 = sand.u32 %s34, 1
        %s294 = smul.addr %s293, 8
        %s295 = scalar_lea.vmem [#allocation2], %s294
        // Predicated region
        $region49: #{tpu_custom_call.1} parent=47 // pred_check
          %p296 = pneg %p47
        $region50: #{tpu_custom_call.1} parent=47 // pred_check_branch
          %298 = sbr.rel (%p296) target = $region52
        $region51: #{tpu_custom_call.1} parent=47 // pred_region
          %299 = dma.done %s292, 128
        $region52: #{tpu_custom_call.1} parent=47 // pred_fallthru
          _
        // Predicated region
        $region53: #{tpu_custom_call.1} parent=47 // pred_check
          %p300 = pneg %p68
        $region54: #{tpu_custom_call.1} parent=47 // pred_check_branch
          %302 = sbr.rel (%p300) target = $region56
        $region55: #{tpu_custom_call.1} parent=47 // pred_region
          %303 = dma.done [#allocation6], 2048
        $region56: #{tpu_custom_call.1} parent=47 // pred_fallthru
          _
        // Predicated region
        $region57: #{tpu_custom_call.1} parent=47 // pred_check
          %p304 = pneg %p110
        $region58: #{tpu_custom_call.1} parent=47 // pred_check_branch
          %306 = sbr.rel (%p304) target = $region60
        $region59: #{tpu_custom_call.1} parent=47 // pred_region
          %307 = dma.done [#allocation6], 2048
        $region60: #{tpu_custom_call.1} parent=47 // pred_fallthru
          _
        // Predicated region
        $region61: #{tpu_custom_call.1} parent=47 // pred_check
          %p308 = pneg %p152
        $region62: #{tpu_custom_call.1} parent=47 // pred_check_branch
          %310 = sbr.rel (%p308) target = $region64
        $region63: #{tpu_custom_call.1} parent=47 // pred_region
          %311 = dma.done [#allocation9], 2048
        $region64: #{tpu_custom_call.1} parent=47 // pred_fallthru
          _
        %s312 = sand.u32 %s34, 1
        %s313 = scalar_lea.sflag [#allocation3], %s312
        %s314 = sand.u32 %s34, 1
        %s315 = smul.addr %s314, 8
        %s316 = scalar_lea.vmem [#allocation2], %s315
        %p317 = pneg %p47
        %p318 = pneg %p44
        %p319 = pneg %p68
        %p320 = pneg %p65
        %p321 = pneg %p89
        %p322 = pneg %p86
        %p323 = pneg %p110
        %p324 = pneg %p107
        %p325 = pneg %p131
        %p326 = pneg %p128
        %p327 = pneg %p152
        %p328 = pneg %p149
        %p329 = pneg %p173
        %p330 = pneg %p170
        %p331 = pneg %p199
        %p332 = pneg %p196
        %s333 = sand.u32 %s186, 1
        %s334 = scalar_lea.sflag [#allocation4], %s333
        %s335 = sand.u32 %s186, 1
        %s336 = smul.addr %s335, 8
        %s337 = scalar_lea.vmem [#allocation10], %s336
        %v338 = vld [vmem:[%s295] sm:$0xff]
        %v339 = vld [vmem:[#allocation5] sm:$0xff]
        %v340 = vld [vmem:[#allocation5 + $0x8] sm:$0xff]
        %v341 = vld [vmem:[#allocation5 + $0x10] sm:$0xff]
        %v342 = vld [vmem:[#allocation5 + $0x18] sm:$0xff]
        %v343 = vld [vmem:[#allocation5 + $0x20] sm:$0xff]
        %v344 = vld [vmem:[#allocation5 + $0x28] sm:$0xff]
        %v345 = vld [vmem:[#allocation5 + $0x30] sm:$0xff]
        %v346 = vld [vmem:[#allocation5 + $0x38] sm:$0xff]
        %v347 = vld [vmem:[#allocation5 + $0x40] sm:$0xff]
        %v348 = vld [vmem:[#allocation5 + $0x48] sm:$0xff]
        %v349 = vld [vmem:[#allocation5 + $0x50] sm:$0xff]
        %v350 = vld [vmem:[#allocation5 + $0x58] sm:$0xff]
        %v351 = vld [vmem:[#allocation5 + $0x60] sm:$0xff]
        %v352 = vld [vmem:[#allocation5 + $0x68] sm:$0xff]
        %v353 = vld [vmem:[#allocation5 + $0x70] sm:$0xff]
        %v354 = vld [vmem:[#allocation5 + $0x78] sm:$0xff]
        %v355 = vld [vmem:[%s2] sm:$0x1]
        %v357 = vlaneseq
        %v358 = vshrl.u32 %v357, 7
        %v359 = vsub.s32 0, %v358
        %v360 = vrot.slane %v355, %v359
        %362 = vmatprep.subr.mxu0 0.0
        %363 = vmatpush1.msra.mxu0 %v339
        %364 = vmatprep.subr.mxu0 0.0
        %365 = vmatpush1.msra.mxu0 %v340
        %366 = vmatprep.subr.mxu0 0.0
        %367 = vmatpush1.msra.mxu0 %v341
        %368 = vmatprep.subr.mxu0 0.0
        %369 = vmatpush1.msra.mxu0 %v342
        %370 = vmatprep.subr.mxu0 0.0
        %371 = vmatpush1.msra.mxu0 %v343
        %372 = vmatprep.subr.mxu0 0.0
        %373 = vmatpush1.msra.mxu0 %v344
        %374 = vmatprep.subr.mxu0 0.0
        %375 = vmatpush1.msra.mxu0 %v345
        %376 = vmatprep.subr.mxu0 0.0
        %377 = vmatpush1.msra.mxu0 %v346
        %378 = vmatprep.subr.mxu0 0.0
        %379 = vmatpush1.msra.mxu0 %v347
        %380 = vmatprep.subr.mxu0 0.0
        %381 = vmatpush1.msra.mxu0 %v348
        %382 = vmatprep.subr.mxu0 0.0
        %383 = vmatpush1.msra.mxu0 %v349
        %384 = vmatprep.subr.mxu0 0.0
        %385 = vmatpush1.msra.mxu0 %v350
        %386 = vmatprep.subr.mxu0 0.0
        %387 = vmatpush1.msra.mxu0 %v351
        %388 = vmatprep.subr.mxu0 0.0
        %389 = vmatpush1.msra.mxu0 %v352
        %390 = vmatprep.subr.mxu0 0.0
        %391 = vmatpush1.msra.mxu0 %v353
        %392 = vmatprep.subr.mxu0 0.0
        %393 = vmatpush1.msra.mxu0 %v354
        %394 = vmatprep.subr.mxu0 0.0
        %395 = vmatpush1.msra.mxu0 0.0
        %396 = vmatprep.subr.mxu0 0.0
        %397 = vmatpush1.msra.mxu0 0.0
        %398 = vmatprep.subr.mxu0 0.0
        %399 = vmatpush1.msra.mxu0 0.0
        %400 = vmatprep.subr.mxu0 0.0
        %401 = vmatpush1.msra.mxu0 0.0
        %402 = vmatprep.subr.mxu0 0.0
        %403 = vmatpush1.msra.mxu0 0.0
        %404 = vmatprep.subr.mxu0 0.0
        %405 = vmatpush1.msra.mxu0 0.0
        %406 = vmatprep.subr.mxu0 0.0
        %407 = vmatpush1.msra.mxu0 0.0
        %408 = vmatprep.subr.mxu0 0.0
        %409 = vmatpush1.msra.mxu0 0.0
        %410 = vmatprep.subr.mxu0 0.0
        %411 = vmatpush1.msra.mxu0 0.0
        %412 = vmatprep.subr.mxu0 0.0
        %413 = vmatpush1.msra.mxu0 0.0
        %414 = vmatprep.subr.mxu0 0.0
        %415 = vmatpush1.msra.mxu0 0.0
        %416 = vmatprep.subr.mxu0 0.0
        %417 = vmatpush1.msra.mxu0 0.0
        %418 = vmatprep.subr.mxu0 0.0
        %419 = vmatpush1.msra.mxu0 0.0
        %420 = vmatprep.subr.mxu0 0.0
        %421 = vmatpush1.msra.mxu0 0.0
        %422 = vmatprep.subr.mxu0 0.0
        %423 = vmatpush1.msra.mxu0 0.0
        %424 = vmatprep.subr.mxu0 0.0
        %425 = vmatpush1.msra.mxu0 0.0
        %426 = vmatprep.mubr.f32.mxu0 0.0
        %427 = vmatmul.mubr.f32.gmra.mrb[0].mxu0 %v338
        %v428 = vpop.f32.mrb[0].mxu0
        %v429 = vadd.f32 %v360, %v428
        %v430 = vpop.f32.mrb[0].mxu0
        %431 = vdwg.mxu0
        %v432 = vmax.f32 %v429, 0.0
        %v433 = vld [vmem:[#allocation7] sm:$0xff]
        %v434 = vld [vmem:[#allocation7 + $0x8] sm:$0xff]
        %v435 = vld [vmem:[#allocation7 + $0x10] sm:$0xff]
        %v436 = vld [vmem:[#allocation7 + $0x18] sm:$0xff]
        %v437 = vld [vmem:[#allocation7 + $0x20] sm:$0xff]
        %v438 = vld [vmem:[#allocation7 + $0x28] sm:$0xff]
        %v439 = vld [vmem:[#allocation7 + $0x30] sm:$0xff]
        %v440 = vld [vmem:[#allocation7 + $0x38] sm:$0xff]
        %v441 = vld [vmem:[#allocation7 + $0x40] sm:$0xff]
        %v442 = vld [vmem:[#allocation7 + $0x48] sm:$0xff]
        %v443 = vld [vmem:[#allocation7 + $0x50] sm:$0xff]
        %v444 = vld [vmem:[#allocation7 + $0x58] sm:$0xff]
        %v445 = vld [vmem:[#allocation7 + $0x60] sm:$0xff]
        %v446 = vld [vmem:[#allocation7 + $0x68] sm:$0xff]
        %v447 = vld [vmem:[#allocation7 + $0x70] sm:$0xff]
        %v448 = vld [vmem:[#allocation7 + $0x78] sm:$0xff]
        %v449 = vld [vmem:[%s4] sm:$0x1]
        %v451 = vlaneseq
        %v452 = vshrl.u32 %v451, 7
        %v453 = vsub.s32 0, %v452
        %v454 = vrot.slane %v449, %v453
        %456 = vmatprep.subr.mxu0 0.0
        %457 = vmatpush1.msra.mxu0 %v433
        %458 = vmatprep.subr.mxu0 0.0
        %459 = vmatpush1.msra.mxu0 %v434
        %460 = vmatprep.subr.mxu0 0.0
        %461 = vmatpush1.msra.mxu0 %v435
        %462 = vmatprep.subr.mxu0 0.0
        %463 = vmatpush1.msra.mxu0 %v436
        %464 = vmatprep.subr.mxu0 0.0
        %465 = vmatpush1.msra.mxu0 %v437
        %466 = vmatprep.subr.mxu0 0.0
        %467 = vmatpush1.msra.mxu0 %v438
        %468 = vmatprep.subr.mxu0 0.0
        %469 = vmatpush1.msra.mxu0 %v439
        %470 = vmatprep.subr.mxu0 0.0
        %471 = vmatpush1.msra.mxu0 %v440
        %472 = vmatprep.subr.mxu0 0.0
        %473 = vmatpush1.msra.mxu0 %v441
        %474 = vmatprep.subr.mxu0 0.0
        %475 = vmatpush1.msra.mxu0 %v442
        %476 = vmatprep.subr.mxu0 0.0
        %477 = vmatpush1.msra.mxu0 %v443
        %478 = vmatprep.subr.mxu0 0.0
        %479 = vmatpush1.msra.mxu0 %v444
        %480 = vmatprep.subr.mxu0 0.0
        %481 = vmatpush1.msra.mxu0 %v445
        %482 = vmatprep.subr.mxu0 0.0
        %483 = vmatpush1.msra.mxu0 %v446
        %484 = vmatprep.subr.mxu0 0.0
        %485 = vmatpush1.msra.mxu0 %v447
        %486 = vmatprep.subr.mxu0 0.0
        %487 = vmatpush1.msra.mxu0 %v448
        %488 = vmatprep.subr.mxu0 0.0
        %489 = vmatpush1.msra.mxu0 0.0
        %490 = vmatprep.subr.mxu0 0.0
        %491 = vmatpush1.msra.mxu0 0.0
        %492 = vmatprep.subr.mxu0 0.0
        %493 = vmatpush1.msra.mxu0 0.0
        %494 = vmatprep.subr.mxu0 0.0
        %495 = vmatpush1.msra.mxu0 0.0
        %496 = vmatprep.subr.mxu0 0.0
        %497 = vmatpush1.msra.mxu0 0.0
        %498 = vmatprep.subr.mxu0 0.0
        %499 = vmatpush1.msra.mxu0 0.0
        %500 = vmatprep.subr.mxu0 0.0
        %501 = vmatpush1.msra.mxu0 0.0
        %502 = vmatprep.subr.mxu0 0.0
        %503 = vmatpush1.msra.mxu0 0.0
        %504 = vmatprep.subr.mxu0 0.0
        %505 = vmatpush1.msra.mxu0 0.0
        %506 = vmatprep.subr.mxu0 0.0
        %507 = vmatpush1.msra.mxu0 0.0
        %508 = vmatprep.subr.mxu0 0.0
        %509 = vmatpush1.msra.mxu0 0.0
        %510 = vmatprep.subr.mxu0 0.0
        %511 = vmatpush1.msra.mxu0 0.0
        %512 = vmatprep.subr.mxu0 0.0
        %513 = vmatpush1.msra.mxu0 0.0
        %514 = vmatprep.subr.mxu0 0.0
        %515 = vmatpush1.msra.mxu0 0.0
        %516 = vmatprep.subr.mxu0 0.0
        %517 = vmatpush1.msra.mxu0 0.0
        %518 = vmatprep.subr.mxu0 0.0
        %519 = vmatpush1.msra.mxu0 0.0
        %520 = vmatprep.mubr.f32.mxu0 0.0
        %521 = vmatmul.mubr.f32.gmra.mrb[0].mxu0 %v432
        %v522 = vpop.f32.mrb[0].mxu0
        %v523 = vadd.f32 %v454, %v522
        %v524 = vpop.f32.mrb[0].mxu0
        %525 = vdwg.mxu0
        %v526 = vmax.f32 %v523, 0.0
        %v527 = vld [vmem:[#allocation8] sm:$0xff]
        %v528 = vld [vmem:[#allocation8 + $0x8] sm:$0xff]
        %v529 = vld [vmem:[#allocation8 + $0x10] sm:$0xff]
        %v530 = vld [vmem:[#allocation8 + $0x18] sm:$0xff]
        %v531 = vld [vmem:[#allocation8 + $0x20] sm:$0xff]
        %v532 = vld [vmem:[#allocation8 + $0x28] sm:$0xff]
        %v533 = vld [vmem:[#allocation8 + $0x30] sm:$0xff]
        %v534 = vld [vmem:[#allocation8 + $0x38] sm:$0xff]
        %v535 = vld [vmem:[#allocation8 + $0x40] sm:$0xff]
        %v536 = vld [vmem:[#allocation8 + $0x48] sm:$0xff]
        %v537 = vld [vmem:[#allocation8 + $0x50] sm:$0xff]
        %v538 = vld [vmem:[#allocation8 + $0x58] sm:$0xff]
        %v539 = vld [vmem:[#allocation8 + $0x60] sm:$0xff]
        %v540 = vld [vmem:[#allocation8 + $0x68] sm:$0xff]
        %v541 = vld [vmem:[#allocation8 + $0x70] sm:$0xff]
        %v542 = vld [vmem:[#allocation8 + $0x78] sm:$0xff]
        %v543 = vld [vmem:[%s6] sm:$0x1]
        %v545 = vlaneseq
        %v546 = vshrl.u32 %v545, 7
        %v547 = vsub.s32 0, %v546
        %v548 = vrot.slane %v543, %v547
        %550 = vmatprep.subr.mxu0 0.0
        %551 = vmatpush1.msra.mxu0 %v527
        %552 = vmatprep.subr.mxu0 0.0
        %553 = vmatpush1.msra.mxu0 %v528
        %554 = vmatprep.subr.mxu0 0.0
        %555 = vmatpush1.msra.mxu0 %v529
        %556 = vmatprep.subr.mxu0 0.0
        %557 = vmatpush1.msra.mxu0 %v530
        %558 = vmatprep.subr.mxu0 0.0
        %559 = vmatpush1.msra.mxu0 %v531
        %560 = vmatprep.subr.mxu0 0.0
        %561 = vmatpush1.msra.mxu0 %v532
        %562 = vmatprep.subr.mxu0 0.0
        %563 = vmatpush1.msra.mxu0 %v533
        %564 = vmatprep.subr.mxu0 0.0
        %565 = vmatpush1.msra.mxu0 %v534
        %566 = vmatprep.subr.mxu0 0.0
        %567 = vmatpush1.msra.mxu0 %v535
        %568 = vmatprep.subr.mxu0 0.0
        %569 = vmatpush1.msra.mxu0 %v536
        %570 = vmatprep.subr.mxu0 0.0
        %571 = vmatpush1.msra.mxu0 %v537
        %572 = vmatprep.subr.mxu0 0.0
        %573 = vmatpush1.msra.mxu0 %v538
        %574 = vmatprep.subr.mxu0 0.0
        %575 = vmatpush1.msra.mxu0 %v539
        %576 = vmatprep.subr.mxu0 0.0
        %577 = vmatpush1.msra.mxu0 %v540
        %578 = vmatprep.subr.mxu0 0.0
        %579 = vmatpush1.msra.mxu0 %v541
        %580 = vmatprep.subr.mxu0 0.0
        %581 = vmatpush1.msra.mxu0 %v542
        %582 = vmatprep.subr.mxu0 0.0
        %583 = vmatpush1.msra.mxu0 0.0
        %584 = vmatprep.subr.mxu0 0.0
        %585 = vmatpush1.msra.mxu0 0.0
        %586 = vmatprep.subr.mxu0 0.0
        %587 = vmatpush1.msra.mxu0 0.0
        %588 = vmatprep.subr.mxu0 0.0
        %589 = vmatpush1.msra.mxu0 0.0
        %590 = vmatprep.subr.mxu0 0.0
        %591 = vmatpush1.msra.mxu0 0.0
        %592 = vmatprep.subr.mxu0 0.0
        %593 = vmatpush1.msra.mxu0 0.0
        %594 = vmatprep.subr.mxu0 0.0
        %595 = vmatpush1.msra.mxu0 0.0
        %596 = vmatprep.subr.mxu0 0.0
        %597 = vmatpush1.msra.mxu0 0.0
        %598 = vmatprep.subr.mxu0 0.0
        %599 = vmatpush1.msra.mxu0 0.0
        %600 = vmatprep.subr.mxu0 0.0
        %601 = vmatpush1.msra.mxu0 0.0
        %602 = vmatprep.subr.mxu0 0.0
        %603 = vmatpush1.msra.mxu0 0.0
        %604 = vmatprep.subr.mxu0 0.0
        %605 = vmatpush1.msra.mxu0 0.0
        %606 = vmatprep.subr.mxu0 0.0
        %607 = vmatpush1.msra.mxu0 0.0
        %608 = vmatprep.subr.mxu0 0.0
        %609 = vmatpush1.msra.mxu0 0.0
        %610 = vmatprep.subr.mxu0 0.0
        %611 = vmatpush1.msra.mxu0 0.0
        %612 = vmatprep.subr.mxu0 0.0
        %613 = vmatpush1.msra.mxu0 0.0
        %614 = vmatprep.mubr.f32.mxu0 0.0
        %615 = vmatmul.mubr.f32.gmra.mrb[0].mxu0 %v526
        %v616 = vpop.f32.mrb[0].mxu0
        %v617 = vadd.f32 %v548, %v616
        %v618 = vpop.f32.mrb[0].mxu0
        %619 = vdwg.mxu0
        %v620 = vmax.f32 %v617, 0.0
        %621 = vst [vmem:[%s337] sm:$0xff] %v620
        %s622 = sand.u32 %s186, 1
        %s623 = scalar_lea.sflag [#allocation4], %s622
        %s624 = sand.u32 %s186, 1
        %s625 = smul.addr %s624, 8
        %s626 = scalar_lea.vmem [#allocation10], %s625
        // Predicated region
        $region65: #{tpu_custom_call.1} parent=47 // pred_check
          %p627 = pneg %p196
        $region66: #{tpu_custom_call.1} parent=47 // pred_check_branch
          %629 = sbr.rel (%p627) target = $region68
        $region67: #{tpu_custom_call.1} parent=47 // pred_region
          %s631 = ssub.s32 128, 128
          %632 = vsyncadd %s623, %s631
          %s633 = smul.addr %s26, 128
          %s634 = scalar_lea.hbm %s7, %s633
          %s636 = sshll.u32 %s626, 4
          %s637 = int_to_ptr.vmem [resolvable:$true] %s636
          %639 = dma.vmem_to_hbm [thread:$0]  %s637, 128, %s634, %s623
        $region68: #{tpu_custom_call.1} parent=47 // pred_fallthru
          _
      $region48: #{tpu_custom_call.1} parent=5 // pred_fallthru
        _
      %p640 = scmp.le.s32.totalorder 2, %s21
      // Predicated region
      $region69: #{tpu_custom_call.1} parent=5 // pred_check
        %p641 = pneg %p640
      $region70: #{tpu_custom_call.1} parent=5 // pred_check_branch
        %643 = sbr.rel (%p641) target = $region72
      $region71: #{tpu_custom_call.1} parent=5 // pred_region
        %s644 = ssub.s32 %s21, 2
        // Predicated region
        $region73: #{tpu_custom_call.1} parent=71 // pred_check
          %p645 = pneg %p202
        $region74: #{tpu_custom_call.1} parent=71 // pred_check_branch
          %647 = sbr.rel (%p645) target = $region76
        $region75: #{tpu_custom_call.1} parent=71 // pred_region
          %s648 = sand.u32 %s187, 1
          %s649 = scalar_lea.sflag [#allocation4], %s648
          %s650 = sand.u32 %s187, 1
          %s651 = smul.addr %s650, 8
          %s652 = scalar_lea.vmem [#allocation10], %s651
          %653 = dma.done %s649, 128
        $region76: #{tpu_custom_call.1} parent=71 // pred_fallthru
          _
      $region72: #{tpu_custom_call.1} parent=5 // pred_fallthru
        _
    $region6: #{tpu_custom_call.1} parent=1 // loop_footer
      %s25 = sadd.s32 1, %s21
    $region7: #{tpu_custom_call.1} parent=1 // loop_footer_branch
      %20 = sbr.rel target = $region3
    $region8: #{tpu_custom_call.1} parent=1 // loop_exit
      _
    %654 = vsyncpa [#allocation3], 1
    %s655 = scalar_lea.sflag [#allocation3], 1
    %656 = vsyncpa %s655, 1
    %657 = vsyncpa [#allocation6], 1
    %658 = vsyncpa [#allocation9], 1
    %659 = vsyncpa [#allocation4], 1
    %s660 = scalar_lea.sflag [#allocation4], 1
    %661 = vsyncpa %s660, 1

// kernel: tpu_custom_call.1
$region0: #{tpu_custom_call.1}
  #allocation0 [shape = 'u32[]', space=smem, size = 0x4, offset = 0x4, fixed_abs, tag = 'smem constant byte address 0x4 - core index']
  #allocation1 [shape = 'u32[144,128]{1,0:T(1,128)}', space=vmem, size = 0x12000, scoped, tag = 'internal scratch']
  #allocation2 [shape = 'f32[8,128]{1,0:T(8,128)}', space=vmem, size = 0x1000, scoped, tag = 'scratch operand']
  %s0 = inlined_call_operand.hbm [shape: f32[16,128], index: 0, kind: input, shape index: {}]
  %s1 = inlined_call_operand.hbm [shape: f32[128,128], index: 1, kind: input, shape index: {}]
  %s2 = inlined_call_operand.vmem [shape: f32[1,128], index: 2, kind: input, shape index: {}]
  %s3 = inlined_call_operand.hbm [shape: f32[16,128], index: 3, kind: output, shape index: {}]
  %s4 = sld [smem:[#allocation0]]
  $region61: #{tpu_custom_call.1} parent=0
    _
  %s6 = ssub.s32 1, %s4
  %s7 = scalar_select 0, %s6, %s4
  $region1: #{tpu_custom_call.1} parent=0
    #allocation3 [shape = 'u8[8192]{0}', space=vmem, size = 0x2000, scoped, tag = 'input window, operand 0']
    #allocation4 [shape = 's32[2]{0}', space=sflag, size = 0x8, scoped, tag = 'scoped memory for tpu_custom_call.1']
    #allocation5 [shape = 's32[2]{0}', space=sflag, size = 0x8, scoped, tag = 'scoped memory for tpu_custom_call.1']
    #allocation6 [shape = 'u8[65536]{0}', space=vmem, size = 0x10000, scoped, tag = 'input window, operand 1, single buffered']
    #allocation7 [shape = 's32[1]{0}', space=sflag, size = 0x4, scoped, tag = 'scoped memory for tpu_custom_call.1']
    #allocation8 [shape = 'u8[8192]{0}', space=vmem, size = 0x2000, scoped, tag = 'output window, operand 0']
    %8 = vsyncpa [#allocation4], 0
    %s9 = scalar_lea.sflag [#allocation4], 1
    %10 = vsyncpa %s9, 0
    %11 = vsyncpa [#allocation7], 0
    %12 = vsyncpa [#allocation5], 0
    %s13 = scalar_lea.sflag [#allocation5], 1
    %14 = vsyncpa %s13, 0
    loop: start=0, step=1, limit=4
    $region2: #{tpu_custom_call.1} parent=1 // loop_pre_header
      _
    $region3: #{tpu_custom_call.1} parent=1 // loop_header
      %s16 = sphi 0, %s20
      %p17 = scmp.ge.s32.totalorder %s16, 4
      %s23 = sphi 0, %s42
      %s24 = sphi 0, %s38
      %s25 = sphi 0, %s34
      %s26 = sphi 0, %s23
      %s27 = sphi 0, %s24
      %s28 = sphi 0, %s25
      %s29 = sphi 0, %s26
      %s30 = sphi 0, %s27
      %s31 = sphi 0, %s28
      %s47 = sphi 0, %s49
      %s50 = sphi 0, %s47
      %s51 = sphi 0, %s50
      %s67 = sphi 0, %s51
      %s75 = sphi 0, %s77
      %s78 = sphi 0, %s75
      %s79 = sphi 0, %s78
      %s95 = sphi 0, %s79
      %s101 = sphi 0, %s103
      %s104 = sphi 0, %s101
      %s105 = sphi 0, %s104
      %s121 = sphi 0, %s105
      %s129 = sphi 0, %s131
      %s132 = sphi 0, %s129
      %s133 = sphi 0, %s132
      %s149 = sphi 0, %s133
    $region4: #{tpu_custom_call.1} parent=1 // loop_header_branch
      %19 = sbr.rel (%p17) target = $region8
    $region5: #{tpu_custom_call.1} parent=1 // loop_body
      %s21 = ssub.s32 %s16, 1
      %s22 = ssub.s32 %s16, 2
      %s32 = sadd.s32 1, %s25
      %p33 = scmp.ge.s32.totalorder %s32, 1
      %s34 = scalar_select %p33, 0, %s32
      %s35 = sadd.s32 1, %s24
      %s36 = scalar_select %p33, %s35, %s24
      %p37 = scmp.ge.s32.totalorder %s36, 1
      %s38 = scalar_select %p37, 0, %s36
      %s39 = sadd.s32 1, %s23
      %s40 = scalar_select %p37, %s39, %s23
      %p41 = scmp.ge.s32.totalorder %s40, 2
      %s42 = scalar_select %p41, 0, %s40
      %s43 = ssub.s32 %s23, %s42
      %s44 = ssub.s32 %s25, %s34
      %s45 = sor.u32 %s43, %s44
      %p46 = scmp.eq.s32.totalorder %s45, 0
      %s48 = sadd.s32 %s47, 1
      %s49 = scalar_select %p46, %s47, %s48
      %p52 = pneg %p46
      %p53 = scmp.eq.s32.totalorder %s16, 1
      %p54 = por %p52, %p53
      %p55 = scmp.ne.s32.totalorder %s47, %s50
      %p56 = scmp.eq.s32.totalorder %s16, 0
      %p57 = por %p55, %p56
      %p58 = scmp.ne.s32.totalorder %s47, %s50
      %p59 = scmp.eq.s32.totalorder %s21, 1
      %p60 = por %p58, %p59
      %p61 = scmp.ne.s32.totalorder %s50, %s51
      %p62 = scmp.eq.s32.totalorder %s21, 0
      %p63 = por %p61, %p62
      %p64 = scmp.ne.s32.totalorder %s50, %s51
      %p65 = scmp.eq.s32.totalorder %s22, 1
      %p66 = por %p64, %p65
      %p68 = scmp.ne.s32.totalorder %s51, %s67
      %p69 = scmp.eq.s32.totalorder %s22, 0
      %p70 = por %p68, %p69
      %s71 = ssub.s32 %s25, %s34
      %s72 = ssub.s32 %s24, %s38
      %s73 = sor.u32 %s71, %s72
      %p74 = scmp.eq.s32.totalorder %s73, 0
      %s76 = sadd.s32 %s75, 1
      %s77 = scalar_select %p74, %s75, %s76
      %p80 = pneg %p74
      %p81 = scmp.eq.s32.totalorder %s16, 1
      %p82 = por %p80, %p81
      %p83 = scmp.ne.s32.totalorder %s75, %s78
      %p84 = scmp.eq.s32.totalorder %s16, 0
      %p85 = por %p83, %p84
      %p86 = scmp.ne.s32.totalorder %s75, %s78
      %p87 = scmp.eq.s32.totalorder %s21, 1
      %p88 = por %p86, %p87
      %p89 = scmp.ne.s32.totalorder %s78, %s79
      %p90 = scmp.eq.s32.totalorder %s21, 0
      %p91 = por %p89, %p90
      %p92 = scmp.ne.s32.totalorder %s78, %s79
      %p93 = scmp.eq.s32.totalorder %s22, 1
      %p94 = por %p92, %p93
      %p96 = scmp.ne.s32.totalorder %s79, %s95
      %p97 = scmp.eq.s32.totalorder %s22, 0
      %p98 = por %p96, %p97
      %s99 = ssub.s32 %s24, %s38
      %p100 = scmp.eq.s32.totalorder %s99, 0
      %s102 = sadd.s32 %s101, 1
      %s103 = scalar_select %p100, %s101, %s102
      %p106 = pneg %p100
      %p107 = scmp.eq.s32.totalorder %s16, 1
      %p108 = por %p106, %p107
      %p109 = scmp.ne.s32.totalorder %s101, %s104
      %p110 = scmp.eq.s32.totalorder %s16, 0
      %p111 = por %p109, %p110
      %p112 = scmp.ne.s32.totalorder %s101, %s104
      %p113 = scmp.eq.s32.totalorder %s21, 1
      %p114 = por %p112, %p113
      %p115 = scmp.ne.s32.totalorder %s104, %s105
      %p116 = scmp.eq.s32.totalorder %s21, 0
      %p117 = por %p115, %p116
      %p118 = scmp.ne.s32.totalorder %s104, %s105
      %p119 = scmp.eq.s32.totalorder %s22, 1
      %p120 = por %p118, %p119
      %p122 = scmp.ne.s32.totalorder %s105, %s121
      %p123 = scmp.eq.s32.totalorder %s22, 0
      %p124 = por %p122, %p123
      %s125 = ssub.s32 %s23, %s42
      %s126 = ssub.s32 %s24, %s38
      %s127 = sor.u32 %s125, %s126
      %p128 = scmp.eq.s32.totalorder %s127, 0
      %s130 = sadd.s32 %s129, 1
      %s131 = scalar_select %p128, %s129, %s130
      %p134 = pneg %p128
      %p135 = scmp.eq.s32.totalorder %s16, 1
      %p136 = por %p134, %p135
      %p137 = scmp.ne.s32.totalorder %s129, %s132
      %p138 = scmp.eq.s32.totalorder %s16, 0
      %p139 = por %p137, %p138
      %p140 = scmp.ne.s32.totalorder %s129, %s132
      %p141 = scmp.eq.s32.totalorder %s21, 1
      %p142 = por %p140, %p141
      %p143 = scmp.ne.s32.totalorder %s132, %s133
      %p144 = scmp.eq.s32.totalorder %s21, 0
      %p145 = por %p143, %p144
      %p146 = scmp.ne.s32.totalorder %s132, %s133
      %p147 = scmp.eq.s32.totalorder %s22, 1
      %p148 = por %p146, %p147
      %p150 = scmp.ne.s32.totalorder %s133, %s149
      %p151 = scmp.eq.s32.totalorder %s22, 0
      %p152 = por %p150, %p151
      %p153 = scmp.le.s32.totalorder 1, %s16
      %p154 = scmp.lt.s32.totalorder %s16, 3
      %p155 = pnand %p153, %p154
      %p156 = pneg %p155
      // Predicated region
      $region9: #{tpu_custom_call.1} parent=5 // pred_check
        _
      $region10: #{tpu_custom_call.1} parent=5 // pred_check_branch
        %158 = sbr.rel (%p155) target = $region12
      $region11: #{tpu_custom_call.1} parent=5 // pred_region
        %s159 = ssub.s32 %s16, 1
        // Predicated region
        $region13: #{tpu_custom_call.1} parent=11 // pred_check
          %p160 = pneg %p91
        $region14: #{tpu_custom_call.1} parent=11 // pred_check_branch
          %162 = sbr.rel (%p160) target = $region16
        $region15: #{tpu_custom_call.1} parent=11 // pred_region
          %s163 = smul.u32 16, %s28
          %s165 = ssub.s32 2048, 2048
          %166 = vsyncadd [#allocation7], %s165
          %s167 = sadd.s32 %s27, %s163
          %s168 = smul.addr %s167, 128
          %s169 = scalar_lea.hbm %s1, %s168
          %s170 = sshll.u32 [#allocation6], 4
          %s171 = int_to_ptr.vmem [resolvable:$true] %s170
          %176 = dma.hbm_to_vmem [thread:$0]  %s169, 2048, %s171, [#allocation7], 128, 128, 8
        $region16: #{tpu_custom_call.1} parent=11 // pred_fallthru
          _
        // Predicated region
        $region17: #{tpu_custom_call.1} parent=11 // pred_check
          %p177 = pneg %p117
        $region18: #{tpu_custom_call.1} parent=11 // pred_check_branch
          %179 = sbr.rel (%p177) target = $region20
        $region19: #{tpu_custom_call.1} parent=11 // pred_region
          %p180 = scmp.lt.s32.totalorder %s27, 0
          %s181 = scalar_select %p180, %s27, 0
          %s182 = scalar_lea.vmem %s2, %s181
        $region20: #{tpu_custom_call.1} parent=11 // pred_fallthru
          _
      $region12: #{tpu_custom_call.1} parent=5 // pred_fallthru
        _
      %p183 = scmp.lt.s32.totalorder %s16, 2
      // Predicated region
      $region21: #{tpu_custom_call.1} parent=5 // pred_check
        %p184 = pneg %p183
      $region22: #{tpu_custom_call.1} parent=5 // pred_check_branch
        %186 = sbr.rel (%p184) target = $region24
      $region23: #{tpu_custom_call.1} parent=5 // pred_region
        // Predicated region
        $region25: #{tpu_custom_call.1} parent=23 // pred_check
          %p187 = pneg %p57
        $region26: #{tpu_custom_call.1} parent=23 // pred_check_branch
          %189 = sbr.rel (%p187) target = $region28
        $region27: #{tpu_custom_call.1} parent=23 // pred_region
          %s190 = sand.u32 %s47, 1
          %s191 = scalar_lea.sflag [#allocation4], %s190
          %s192 = sand.u32 %s47, 1
          %s193 = smul.addr %s192, 8
          %s194 = scalar_lea.vmem [#allocation3], %s193
          %s196 = ssub.s32 128, 128
          %197 = vsyncadd %s191, %s196
          %s198 = sadd.s32 %s25, %s23
          %s199 = smul.addr %s198, 128
          %s200 = scalar_lea.hbm %s0, %s199
          %s202 = sshll.u32 %s194, 4
          %s203 = int_to_ptr.vmem [resolvable:$true] %s202
          %205 = dma.hbm_to_vmem [thread:$0]  %s200, 128, %s203, %s191
        $region28: #{tpu_custom_call.1} parent=23 // pred_fallthru
          _
      $region24: #{tpu_custom_call.1} parent=5 // pred_fallthru
        _
      %p206 = scmp.le.s32.totalorder 1, %s16
      %p207 = scmp.lt.s32.totalorder %s16, 3
      %p208 = pnand %p206, %p207
      %p209 = pneg %p208
      // Predicated region
      $region29: #{tpu_custom_call.1} parent=5 // pred_check
        _
      $region30: #{tpu_custom_call.1} parent=5 // pred_check_branch
        %211 = sbr.rel (%p208) target = $region32
      $region31: #{tpu_custom_call.1} parent=5 // pred_region
        %s212 = ssub.s32 %s16, 1
        %s213 = sand.u32 %s50, 1
        %s214 = scalar_lea.sflag [#allocation4], %s213
        %s215 = sand.u32 %s50, 1
        %s216 = smul.addr %s215, 8
        %s217 = scalar_lea.vmem [#allocation3], %s216
        // Predicated region
        $region33: #{tpu_custom_call.1} parent=31 // pred_check
          %p218 = pneg %p63
        $region34: #{tpu_custom_call.1} parent=31 // pred_check_branch
          %220 = sbr.rel (%p218) target = $region36
        $region35: #{tpu_custom_call.1} parent=31 // pred_region
          %221 = dma.done %s214, 128
        $region36: #{tpu_custom_call.1} parent=31 // pred_fallthru
          _
        // Predicated region
        $region37: #{tpu_custom_call.1} parent=31 // pred_check
          %p222 = pneg %p91
        $region38: #{tpu_custom_call.1} parent=31 // pred_check_branch
          %224 = sbr.rel (%p222) target = $region40
        $region39: #{tpu_custom_call.1} parent=31 // pred_region
          %225 = dma.done [#allocation7], 2048
        $region40: #{tpu_custom_call.1} parent=31 // pred_fallthru
          _
        %s226 = sand.u32 %s50, 1
        %s227 = scalar_lea.sflag [#allocation4], %s226
        %s228 = sand.u32 %s50, 1
        %s229 = smul.addr %s228, 8
        %s230 = scalar_lea.vmem [#allocation3], %s229
        %p231 = pneg %p63
        %p232 = pneg %p60
        %p233 = pneg %p91
        %p234 = pneg %p88
        %p235 = scmp.lt.s32.totalorder %s27, 0
        %s236 = scalar_select %p235, %s27, 0
        %s237 = scalar_lea.vmem %s2, %s236
        %p238 = pneg %p117
        %p239 = pneg %p114
        %p240 = pneg %p145
        %p241 = pneg %p142
        %s242 = sand.u32 %s132, 1
        %s243 = scalar_lea.sflag [#allocation5], %s242
        %s244 = sand.u32 %s132, 1
        %s245 = smul.addr %s244, 8
        %s246 = scalar_lea.vmem [#allocation8], %s245
        %s247 = smul.u32 16, %s28
        %p248 = scmp.lt.s32.totalorder %s27, 0
        %s249 = scalar_select %p248, %s27, 0
        %s250 = scalar_lea.vmem %s2, %s249
        %p251 = scmp.eq.s32.totalorder %s28, 0
        // Predicated region
        $region41: #{tpu_custom_call.1} parent=31 // pred_check
          %p252 = pneg %p251
        $region42: #{tpu_custom_call.1} parent=31 // pred_check_branch
          %254 = sbr.rel (%p252) target = $region44
        $region43: #{tpu_custom_call.1} parent=31 // pred_region
          %255 = vst [vmem:[#allocation2] sm:$0xff] 0.0
        $region44: #{tpu_custom_call.1} parent=31 // pred_fallthru
          _
        %v256 = vld [vmem:[#allocation2] sm:$0xff]
        %v257 = vld [vmem:[%s217] sm:$0xff]
        %v258 = vld [vmem:[#allocation6] sm:$0xff]
        %v259 = vld [vmem:[#allocation6 + $0x8] sm:$0xff]
        %v260 = vld [vmem:[#allocation6 + $0x10] sm:$0xff]
        %v261 = vld [vmem:[#allocation6 + $0x18] sm:$0xff]
        %v262 = vld [vmem:[#allocation6 + $0x20] sm:$0xff]
        %v263 = vld [vmem:[#allocation6 + $0x28] sm:$0xff]
        %v264 = vld [vmem:[#allocation6 + $0x30] sm:$0xff]
        %v265 = vld [vmem:[#allocation6 + $0x38] sm:$0xff]
        %v266 = vld [vmem:[#allocation6 + $0x40] sm:$0xff]
        %v267 = vld [vmem:[#allocation6 + $0x48] sm:$0xff]
        %v268 = vld [vmem:[#allocation6 + $0x50] sm:$0xff]
        %v269 = vld [vmem:[#allocation6 + $0x58] sm:$0xff]
        %v270 = vld [vmem:[#allocation6 + $0x60] sm:$0xff]
        %v271 = vld [vmem:[#allocation6 + $0x68] sm:$0xff]
        %v272 = vld [vmem:[#allocation6 + $0x70] sm:$0xff]
        %v273 = vld [vmem:[#allocation6 + $0x78] sm:$0xff]
        %274 = vmatprep.subr.mxu0 0.0
        %275 = vmatpush1.msra.mxu0 %v258
        %276 = vmatprep.subr.mxu0 0.0
        %277 = vmatpush1.msra.mxu0 %v259
        %278 = vmatprep.subr.mxu0 0.0
        %279 = vmatpush1.msra.mxu0 %v260
        %280 = vmatprep.subr.mxu0 0.0
        %281 = vmatpush1.msra.mxu0 %v261
        %282 = vmatprep.subr.mxu0 0.0
        %283 = vmatpush1.msra.mxu0 %v262
        %284 = vmatprep.subr.mxu0 0.0
        %285 = vmatpush1.msra.mxu0 %v263
        %286 = vmatprep.subr.mxu0 0.0
        %287 = vmatpush1.msra.mxu0 %v264
        %288 = vmatprep.subr.mxu0 0.0
        %289 = vmatpush1.msra.mxu0 %v265
        %290 = vmatprep.subr.mxu0 0.0
        %291 = vmatpush1.msra.mxu0 %v266
        %292 = vmatprep.subr.mxu0 0.0
        %293 = vmatpush1.msra.mxu0 %v267
        %294 = vmatprep.subr.mxu0 0.0
        %295 = vmatpush1.msra.mxu0 %v268
        %296 = vmatprep.subr.mxu0 0.0
        %297 = vmatpush1.msra.mxu0 %v269
        %298 = vmatprep.subr.mxu0 0.0
        %299 = vmatpush1.msra.mxu0 %v270
        %300 = vmatprep.subr.mxu0 0.0
        %301 = vmatpush1.msra.mxu0 %v271
        %302 = vmatprep.subr.mxu0 0.0
        %303 = vmatpush1.msra.mxu0 %v272
        %304 = vmatprep.subr.mxu0 0.0
        %305 = vmatpush1.msra.mxu0 %v273
        %306 = vmatprep.subr.mxu0 0.0
        %307 = vmatpush1.msra.mxu0 0.0
        %308 = vmatprep.subr.mxu0 0.0
        %309 = vmatpush1.msra.mxu0 0.0
        %310 = vmatprep.subr.mxu0 0.0
        %311 = vmatpush1.msra.mxu0 0.0
        %312 = vmatprep.subr.mxu0 0.0
        %313 = vmatpush1.msra.mxu0 0.0
        %314 = vmatprep.subr.mxu0 0.0
        %315 = vmatpush1.msra.mxu0 0.0
        %316 = vmatprep.subr.mxu0 0.0
        %317 = vmatpush1.msra.mxu0 0.0
        %318 = vmatprep.subr.mxu0 0.0
        %319 = vmatpush1.msra.mxu0 0.0
        %320 = vmatprep.subr.mxu0 0.0
        %321 = vmatpush1.msra.mxu0 0.0
        %322 = vmatprep.subr.mxu0 0.0
        %323 = vmatpush1.msra.mxu0 0.0
        %324 = vmatprep.subr.mxu0 0.0
        %325 = vmatpush1.msra.mxu0 0.0
        %326 = vmatprep.subr.mxu0 0.0
        %327 = vmatpush1.msra.mxu0 0.0
        %328 = vmatprep.subr.mxu0 0.0
        %329 = vmatpush1.msra.mxu0 0.0
        %330 = vmatprep.subr.mxu0 0.0
        %331 = vmatpush1.msra.mxu0 0.0
        %332 = vmatprep.subr.mxu0 0.0
        %333 = vmatpush1.msra.mxu0 0.0
        %334 = vmatprep.subr.mxu0 0.0
        %335 = vmatpush1.msra.mxu0 0.0
        %336 = vmatprep.subr.mxu0 0.0
        %337 = vmatpush1.msra.mxu0 0.0
        %338 = vmatprep.mubr.f32.mxu0 0.0
        %339 = vmatmul.mubr.f32.gmra.mrb[0].mxu0 %v257
        %v340 = vpop.f32.mrb[0].mxu0
        %v341 = vadd.f32 0.0, %v340
        %v342 = vpop.f32.mrb[0].mxu0
        %343 = vdwg.mxu0
        %v344 = vadd.f32 %v256, %v341
        %345 = vst [vmem:[#allocation2] sm:$0xff] %v344
        // Predicated region
        $region45: #{tpu_custom_call.1} parent=31 // pred_check
          %p346 = pneg %p251
        $region46: #{tpu_custom_call.1} parent=31 // pred_check_branch
          %348 = sbr.rel (%p346) target = $region48
        $region47: #{tpu_custom_call.1} parent=31 // pred_region
          %v349 = vld [vmem:[#allocation2] sm:$0xff]
          %v350 = vld [vmem:[%s250] sm:$0x1]
          %v352 = vlaneseq
          %v353 = vshrl.u32 %v352, 7
          %v354 = vsub.s32 0, %v353
          %v355 = vrot.slane %v350, %v354
          %v357 = vadd.f32 %v349, %v355
          %v358 = vmax.f32 %v357, 0.0
          %359 = vst [vmem:[%s246] sm:$0xff] %v358
        $region48: #{tpu_custom_call.1} parent=31 // pred_fallthru
          _
        %s360 = sand.u32 %s132, 1
        %s361 = scalar_lea.sflag [#allocation5], %s360
        %s362 = sand.u32 %s132, 1
        %s363 = smul.addr %s362, 8
        %s364 = scalar_lea.vmem [#allocation8], %s363
        // Predicated region
        $region49: #{tpu_custom_call.1} parent=31 // pred_check
          %p365 = pneg %p142
        $region50: #{tpu_custom_call.1} parent=31 // pred_check_branch
          %367 = sbr.rel (%p365) target = $region52
        $region51: #{tpu_custom_call.1} parent=31 // pred_region
          %s369 = ssub.s32 128, 128
          %370 = vsyncadd %s361, %s369
          %s371 = sadd.s32 %s27, %s26
          %s372 = smul.addr %s371, 128
          %s373 = scalar_lea.hbm %s3, %s372
          %s375 = sshll.u32 %s364, 4
          %s376 = int_to_ptr.vmem [resolvable:$true] %s375
          %378 = dma.vmem_to_hbm [thread:$0]  %s376, 128, %s373, %s361
        $region52: #{tpu_custom_call.1} parent=31 // pred_fallthru
          _
      $region32: #{tpu_custom_call.1} parent=5 // pred_fallthru
        _
      %p379 = scmp.le.s32.totalorder 2, %s16
      // Predicated region
      $region53: #{tpu_custom_call.1} parent=5 // pred_check
        %p380 = pneg %p379
      $region54: #{tpu_custom_call.1} parent=5 // pred_check_branch
        %382 = sbr.rel (%p380) target = $region56
      $region55: #{tpu_custom_call.1} parent=5 // pred_region
        %s383 = ssub.s32 %s16, 2
        // Predicated region
        $region57: #{tpu_custom_call.1} parent=55 // pred_check
          %p384 = pneg %p148
        $region58: #{tpu_custom_call.1} parent=55 // pred_check_branch
          %386 = sbr.rel (%p384) target = $region60
        $region59: #{tpu_custom_call.1} parent=55 // pred_region
          %s387 = sand.u32 %s133, 1
          %s388 = scalar_lea.sflag [#allocation5], %s387
          %s389 = sand.u32 %s133, 1
          %s390 = smul.addr %s389, 8
          %s391 = scalar_lea.vmem [#allocation8], %s390
          %392 = dma.done %s388, 128
        $region60: #{tpu_custom_call.1} parent=55 // pred_fallthru
          _
      $region56: #{tpu_custom_call.1} parent=5 // pred_fallthru
        _
    $region6: #{tpu_custom_call.1} parent=1 // loop_footer
      %s20 = sadd.s32 1, %s16
    $region7: #{tpu_custom_call.1} parent=1 // loop_footer_branch
      %15 = sbr.rel target = $region3
    $region8: #{tpu_custom_call.1} parent=1 // loop_exit
      _
    %393 = vsyncpa [#allocation4], 1
    %s394 = scalar_lea.sflag [#allocation4], 1
    %395 = vsyncpa %s394, 1
    %396 = vsyncpa [#allocation7], 1
    %397 = vsyncpa [#allocation5], 1
    %s398 = scalar_lea.sflag [#allocation5], 1
    %399 = vsyncpa %s398, 1

</llo_original>
